<compile_context>
chip_gen: v5e
topology: v5e:2x2
jax: 0.10.0
libtpu: 0.0.40
codegen_flags: <defaults>
</compile_context>

<pallas_src>
import functools

import jax
import jax.numpy as jnp
from jax.experimental import pallas as pl
from jax.experimental.pallas import tpu as pltpu

# ---------------- scaled-down ViT-B/16-style configuration ----------------
IMG = 32              # (vit_b_16: 224)
PATCH = 16            # kernel_size = stride = 16 (as in the module)
IN_CH = 1             # conv_proj replaced with in_channels=1
HIDDEN = 128          # (vit_b_16: 768)
NUM_HEADS = 4         # (vit_b_16: 12)
HEAD_DIM = HIDDEN // NUM_HEADS
NUM_LAYERS = 2        # (vit_b_16: 12)
MLP_DIM = 4 * HIDDEN  # same 4x ratio as vit_b_16
NUM_CLASSES = 10
NUM_CLASSES_PAD = 128  # lane-dense head output, sliced to NUM_CLASSES outside
LN_EPS = 1e-6          # torchvision ViT uses LayerNorm(eps=1e-6)

N_PATCH = (IMG // PATCH) ** 2      # patch tokens per image
SEQ = N_PATCH + 1                  # +1 class token
SEQ_PAD = 8                        # sublane-aligned padded sequence length
PATCH_DIM = IN_CH * PATCH * PATCH  # flattened conv_proj receptive field

IMGS_PER_BLOCK = 1     # images per grid step (unit sharded across TCs)


# ----------------------------- in-kernel math ------------------------------
def _layernorm(x, w, b):
    mu = jnp.mean(x, axis=-1, keepdims=True)
    var = jnp.mean((x - mu) ** 2, axis=-1, keepdims=True)
    return (x - mu) * jax.lax.rsqrt(var + LN_EPS) * w + b


# --------------------- fused, layer-streamed forward kernel -----------------
def vit_block_kernel(patches_ref, embed_bias_ref, conv_w_ref,
                     ln1w_ref, ln1b_ref, qkvw_ref, qkvb_ref,
                     outw_ref, outb_ref, ln2w_ref, ln2b_ref,
                     m1w_ref, m1b_ref, m2w_ref, m2b_ref,
                     lnf_w_ref, lnf_b_ref, head_w_ref, head_b_ref,
                     o_ref, x_scr, *, imgs_per_block):
    f32 = jnp.float32
    bf16 = jnp.bfloat16
    layer = pl.program_id(1)
    rows = imgs_per_block * SEQ_PAD

    # ---- layer 0 only: patch embedding + [cls | tok | pad] + pos assembly ----
    @pl.when(layer == 0)
    def _embed():
        # Conv2d(1, D, 16, stride=16) over pre-padded patch rows == one matmul
        # (cls/pad rows are zero, so they contribute nothing).
        tok = jnp.dot(patches_ref[...], conv_w_ref[...],
                      preferred_element_type=f32)            # (rows, D)
        tok = tok.reshape(imgs_per_block, SEQ_PAD, HIDDEN)
        # embed_bias rows: [cls+pos0 | conv_b+pos1.. | zeros]; broadcast add.
        tok = tok + embed_bias_ref[...][None, :, :]
        x_scr[...] = tok.reshape(rows, HIDDEN)

    x = x_scr[...]                                            # (rows, D) f32

    # ---- self-attention: per-image, all heads in one batched dot_general ----
    h = _layernorm(x, ln1w_ref[...], ln1b_ref[...])
    qkv = jnp.dot(h.astype(bf16), qkvw_ref[...],
                  preferred_element_type=f32) + qkvb_ref[...]  # (rows, 3D)

    # Only a per-key padding bias is needed (no cross-batch masking).
    kidx = jax.lax.broadcasted_iota(jnp.int32, (1, 1, SEQ_PAD), 2)
    key_bias = jnp.where(kidx < SEQ, 0.0, -1e30).astype(f32)
    scale = 1.0 / (HEAD_DIM ** 0.5)

    def split_heads(rows2d):   # (SEQ_PAD, D) -> (H, SEQ_PAD, HEAD_DIM)
        return jnp.concatenate(
            [rows2d[None, :, hh * HEAD_DIM:(hh + 1) * HEAD_DIM]
             for hh in range(NUM_HEADS)], axis=0)

    ctx_rows = []
    for b in range(imgs_per_block):        # static, tiny (images in the block)
        r0 = b * SEQ_PAD
        q_h = split_heads(qkv[r0:r0 + SEQ_PAD, 0 * HIDDEN:1 * HIDDEN])
        k_h = split_heads(qkv[r0:r0 + SEQ_PAD, 1 * HIDDEN:2 * HIDDEN])
        v_h = split_heads(qkv[r0:r0 + SEQ_PAD, 2 * HIDDEN:3 * HIDDEN])
        s = jnp.einsum('hqd,hkd->hqk', q_h.astype(bf16), k_h.astype(bf16),
                       preferred_element_type=f32) * scale + key_bias
        s = s - jnp.max(s, axis=-1, keepdims=True)
        p = jnp.exp(s)
        denom = jnp.sum(p, axis=-1, keepdims=True)            # (H, S, 1)
        ctx = jnp.einsum('hqk,hkd->hqd', p.astype(bf16), v_h.astype(bf16),
                         preferred_element_type=f32)
        # Deferred softmax normalization: scale the (S, HEAD_DIM) context
        # instead of the (S, S) probability matrix.
        ctx = ctx * pl.reciprocal(denom, approx=True)
        ctx_rows.append(jnp.concatenate([ctx[hh] for hh in range(NUM_HEADS)],
                                        axis=-1))             # (SEQ_PAD, D)
    ctx2 = (ctx_rows[0] if imgs_per_block == 1
            else jnp.concatenate(ctx_rows, axis=0))           # (rows, D)

    attn = jnp.dot(ctx2.astype(bf16), outw_ref[...],
                   preferred_element_type=f32) + outb_ref[...]
    x = x + attn                                              # residual 1

    # ---- MLP sub-block ----
    h2 = _layernorm(x, ln2w_ref[...], ln2b_ref[...])
    h2 = jnp.dot(h2.astype(bf16), m1w_ref[...],
                 preferred_element_type=f32) + m1b_ref[...]
    # TODO(synk): torch nn.GELU() is exact-erf; tanh approx differs ~1e-3.
    h2 = jax.nn.gelu(h2, approximate=True)
    h2 = jnp.dot(h2.astype(bf16), m2w_ref[...],
                 preferred_element_type=f32) + m2b_ref[...]
    x = x + h2                                                # residual 2

    x_scr[...] = x                                            # carry to next layer

    # ---- last layer only: final LayerNorm + classifier head on cls rows ----
    @pl.when(layer == pl.num_programs(1) - 1)
    def _head():
        cls_rows = x.reshape(imgs_per_block, SEQ_PAD, HIDDEN)[:, 0, :]  # (BB, D)
        hc = _layernorm(cls_rows, lnf_w_ref[...], lnf_b_ref[...])
        o_ref[...] = jnp.dot(hc.astype(bf16), head_w_ref[...],
                             preferred_element_type=f32) + head_b_ref[...]


# ------------------------------ parameters ---------------------------------
def init_params(key):
    keys = iter(jax.random.split(key, 16))

    def nrm(shape, dtype=jnp.bfloat16, std=0.02):
        v = std * jax.random.normal(next(keys), shape, dtype=jnp.float32)
        return v.astype(dtype)

    L, D, MD = NUM_LAYERS, HIDDEN, MLP_DIM
    head_w = jnp.zeros((D, NUM_CLASSES_PAD), jnp.float32)
    head_w = head_w.at[:, :NUM_CLASSES].set(
        0.02 * jax.random.normal(next(keys), (D, NUM_CLASSES), jnp.float32))

    return {
        "conv_w": nrm((PATCH_DIM, D)),                # conv_proj as matmul, bf16
        "conv_b": jnp.zeros((1, D), jnp.float32),
        "cls_token": jnp.zeros((1, D), jnp.float32),
        "pos_emb": nrm((SEQ, D), dtype=jnp.float32),
        "ln_w": jnp.ones((1, D), jnp.float32),
        "ln_b": jnp.zeros((1, D), jnp.float32),
        "head_w": head_w.astype(jnp.bfloat16),        # lane-padded to 128
        "head_b": jnp.zeros((1, NUM_CLASSES_PAD), jnp.float32),
        # per-layer weights stacked on a leading L axis (layer-streamed)
        "layers": dict(
            ln1_w=jnp.ones((L, 1, D), jnp.float32),
            ln1_b=jnp.zeros((L, 1, D), jnp.float32),
            qkv_w=nrm((L, D, 3 * D)),
            qkv_b=jnp.zeros((L, 1, 3 * D), jnp.float32),
            out_w=nrm((L, D, D)),
            out_b=jnp.zeros((L, 1, D), jnp.float32),
            ln2_w=jnp.ones((L, 1, D), jnp.float32),
            ln2_b=jnp.zeros((L, 1, D), jnp.float32),
            mlp1_w=nrm((L, D, MD)),
            mlp1_b=jnp.zeros((L, 1, MD), jnp.float32),
            mlp2_w=nrm((L, MD, D)),
            mlp2_b=jnp.zeros((L, 1, D), jnp.float32),
        ),
    }


# ------------------------------ forward pass --------------------------------
def _patchify_padded(x_nchw):
    """NCHW -> (B*SEQ_PAD, C*P*P) bf16; cls slot (row 0) and pad rows are zero."""
    b = x_nchw.shape[0]
    xb = x_nchw.reshape(b, IN_CH, IMG // PATCH, PATCH, IMG // PATCH, PATCH)
    xb = xb.transpose(0, 2, 4, 1, 3, 5)               # (B, nh, nw, C, P, P)
    patches = xb.reshape(b, N_PATCH, PATCH_DIM)
    padded = jnp.zeros((b, SEQ_PAD, PATCH_DIM), x_nchw.dtype)
    padded = padded.at[:, 1:SEQ, :].set(patches)
    return padded.reshape(b * SEQ_PAD, PATCH_DIM).astype(jnp.bfloat16)


@jax.jit
def vit_forward(x_nchw, params):
    b = x_nchw.shape[0]
    assert b % IMGS_PER_BLOCK == 0
    n_blk = b // IMGS_PER_BLOCK
    patches = _patchify_padded(x_nchw)

    # Parameter-only precompute: per-row additive embedding bias
    # row 0 = cls_token + pos[0]; rows 1..SEQ-1 = conv_b + pos[1..]; pad rows = 0.
    embed_bias = jnp.zeros((SEQ_PAD, HIDDEN), jnp.float32)
    embed_bias = embed_bias.at[0, :].set(params["cls_token"][0]
                                         + params["pos_emb"][0])
    embed_bias = embed_bias.at[1:SEQ, :].set(params["conv_b"]
                                             + params["pos_emb"][1:SEQ])

    lp = params["layers"]
    D, MD, CPP = HIDDEN, MLP_DIM, PATCH_DIM
    rows = IMGS_PER_BLOCK * SEQ_PAD

    def const_spec(shape):          # resident across the whole grid
        return pl.BlockSpec(shape, lambda bb, l: (0,) * len(shape))

    def layer_spec(*shape):         # stacked (L, *shape) weights, layer-streamed
        return pl.BlockSpec((None,) + shape,
                            lambda bb, l: (l,) + (0,) * len(shape))

    in_specs = [
        pl.BlockSpec((rows, CPP), lambda bb, l: (bb, 0)),    # padded patches
        const_spec((SEQ_PAD, D)),                            # embed_bias
        const_spec((CPP, D)),                                # conv_w
        layer_spec(1, D), layer_spec(1, D),                  # ln1 w, b
        layer_spec(D, 3 * D), layer_spec(1, 3 * D),          # qkv w, b
        layer_spec(D, D), layer_spec(1, D),                  # out-proj w, b
        layer_spec(1, D), layer_spec(1, D),                  # ln2 w, b
        layer_spec(D, MD), layer_spec(1, MD),                # mlp1 w, b
        layer_spec(MD, D), layer_spec(1, D),                 # mlp2 w, b
        const_spec((1, D)), const_spec((1, D)),              # final LN w, b
        const_spec((D, NUM_CLASSES_PAD)),                    # head w
        const_spec((1, NUM_CLASSES_PAD)),                    # head b
    ]

    logits_pad = pl.pallas_call(
        functools.partial(vit_block_kernel, imgs_per_block=IMGS_PER_BLOCK),
        grid=(n_blk, NUM_LAYERS),
        in_specs=in_specs,
        out_specs=pl.BlockSpec((None, IMGS_PER_BLOCK, NUM_CLASSES_PAD),
                               lambda bb, l: (bb, 0, 0)),
        out_shape=jax.ShapeDtypeStruct(
            (n_blk, IMGS_PER_BLOCK, NUM_CLASSES_PAD), jnp.float32),
        scratch_shapes=[pltpu.VMEM((rows, HIDDEN), jnp.float32)],
        compiler_params=pltpu.CompilerParams(
            dimension_semantics=("parallel", "arbitrary"),
            vmem_limit_bytes=48 * 1024 * 1024),
    )(patches, embed_bias, params["conv_w"],
      lp["ln1_w"], lp["ln1_b"], lp["qkv_w"], lp["qkv_b"],
      lp["out_w"], lp["out_b"], lp["ln2_w"], lp["ln2_b"],
      lp["mlp1_w"], lp["mlp1_b"], lp["mlp2_w"], lp["mlp2_b"],
      params["ln_w"], params["ln_b"], params["head_w"], params["head_b"])

    return logits_pad.reshape(b, NUM_CLASSES_PAD)[:, :NUM_CLASSES]


# --------------------------------- main --------------------------------------
if __name__ == "__main__":
    root = jax.random.PRNGKey(0)
    k_x, k_p = jax.random.split(root)

    x = jax.random.normal(k_x, (2, IN_CH, IMG, IMG), dtype=jnp.float32)  # NCHW
    params = init_params(k_p)

    logits = vit_forward(x, params)
    jax.block_until_ready(logits)
    assert logits.shape == (2, NUM_CLASSES)
    print("KERNEL_OK")
</pallas_src>

<mosaic_0001>
module attributes {stable_mosaic.version = 11 : i64} {
  func.func @vit_block_kernel(%arg0: i32, %arg1: i32, %arg2: memref<8x256xbf16, #tpu.memory_space<vmem>>, %arg3: memref<8x128xf32, #tpu.memory_space<vmem>>, %arg4: memref<256x128xbf16, #tpu.memory_space<vmem>>, %arg5: memref<1x1x128xf32, #tpu.memory_space<vmem>>, %arg6: memref<1x1x128xf32, #tpu.memory_space<vmem>>, %arg7: memref<1x128x384xbf16, #tpu.memory_space<vmem>>, %arg8: memref<1x1x384xf32, #tpu.memory_space<vmem>>, %arg9: memref<1x128x128xbf16, #tpu.memory_space<vmem>>, %arg10: memref<1x1x128xf32, #tpu.memory_space<vmem>>, %arg11: memref<1x1x128xf32, #tpu.memory_space<vmem>>, %arg12: memref<1x1x128xf32, #tpu.memory_space<vmem>>, %arg13: memref<1x128x512xbf16, #tpu.memory_space<vmem>>, %arg14: memref<1x1x512xf32, #tpu.memory_space<vmem>>, %arg15: memref<1x512x128xbf16, #tpu.memory_space<vmem>>, %arg16: memref<1x1x128xf32, #tpu.memory_space<vmem>>, %arg17: memref<1x128xf32, #tpu.memory_space<vmem>>, %arg18: memref<1x128xf32, #tpu.memory_space<vmem>>, %arg19: memref<128x128xbf16, #tpu.memory_space<vmem>>, %arg20: memref<1x128xf32, #tpu.memory_space<vmem>>, %arg21: memref<1x1x128xf32, #tpu.memory_space<vmem>>, %arg22: memref<8x128xf32, #tpu.memory_space<vmem>>) attributes {dimension_semantics = [#tpu.dimension_semantics<parallel>, #tpu.dimension_semantics<arbitrary>], iteration_bounds = array<i64: 2, 2>, scalar_prefetch = 0 : i64, scratch_operands = 1 : i64, tpu.core_type = #tpu.core_type<tc>, window_params = [{transform_indices = @transform_0, window_bounds = array<i64: 8, 256>}, {pipeline_mode = #tpu.pipeline_mode<synchronous>, transform_indices = @transform_1, window_bounds = array<i64: 8, 128>}, {pipeline_mode = #tpu.pipeline_mode<synchronous>, transform_indices = @transform_2, window_bounds = array<i64: 256, 128>}, {transform_indices = @transform_3, window_bounds = array<i64: 1, 1, 128>}, {transform_indices = @transform_4, window_bounds = array<i64: 1, 1, 128>}, {transform_indices = @transform_5, window_bounds = array<i64: 1, 128, 384>}, {transform_indices = @transform_6, window_bounds = array<i64: 1, 1, 384>}, {transform_indices = @transform_7, window_bounds = array<i64: 1, 128, 128>}, {transform_indices = @transform_8, window_bounds = array<i64: 1, 1, 128>}, {transform_indices = @transform_9, window_bounds = array<i64: 1, 1, 128>}, {transform_indices = @transform_10, window_bounds = array<i64: 1, 1, 128>}, {transform_indices = @transform_11, window_bounds = array<i64: 1, 128, 512>}, {transform_indices = @transform_12, window_bounds = array<i64: 1, 1, 512>}, {transform_indices = @transform_13, window_bounds = array<i64: 1, 512, 128>}, {transform_indices = @transform_14, window_bounds = array<i64: 1, 1, 128>}, {pipeline_mode = #tpu.pipeline_mode<synchronous>, transform_indices = @transform_15, window_bounds = array<i64: 1, 128>}, {pipeline_mode = #tpu.pipeline_mode<synchronous>, transform_indices = @transform_16, window_bounds = array<i64: 1, 128>}, {pipeline_mode = #tpu.pipeline_mode<synchronous>, transform_indices = @transform_17, window_bounds = array<i64: 128, 128>}, {pipeline_mode = #tpu.pipeline_mode<synchronous>, transform_indices = @transform_18, window_bounds = array<i64: 1, 128>}, {transform_indices = @transform_19, window_bounds = array<i64: 1, 1, 128>}]} {
    %c0_i32 = arith.constant 0 : i32
    %0 = arith.cmpi eq, %arg1, %c0_i32 : i32
    %1 = arith.extui %0 : i1 to i32
    %c0_i32_0 = arith.constant 0 : i32
    %2 = arith.cmpi ne, %1, %c0_i32_0 : i32
    scf.if %2 {
      %c0_65 = arith.constant 0 : index
      %c0_66 = arith.constant 0 : index
      %172 = vector.load %arg2[%c0_65, %c0_66] : memref<8x256xbf16, #tpu.memory_space<vmem>>, vector<8x256xbf16>
      %c0_67 = arith.constant 0 : index
      %c0_68 = arith.constant 0 : index
      %173 = vector.load %arg4[%c0_67, %c0_68] : memref<256x128xbf16, #tpu.memory_space<vmem>>, vector<256x128xbf16>
      %cst_69 = arith.constant dense<0.000000e+00> : vector<8x128xf32>
      %174 = tpu.matmul %172, %173, %cst_69 {dimension_numbers = #tpu.dot_dimension_numbers<[1], [0], [0], [1], [0, 0, 1, 1], [], []>} : vector<8x256xbf16>, vector<256x128xbf16>, vector<8x128xf32> -> vector<8x128xf32>
      %175 = vector.shape_cast %174 : vector<8x128xf32> to vector<1x8x128xf32>
      %c0_70 = arith.constant 0 : index
      %c0_71 = arith.constant 0 : index
      %176 = vector.load %arg3[%c0_70, %c0_71] : memref<8x128xf32, #tpu.memory_space<vmem>>, vector<8x128xf32>
      %177 = vector.shape_cast %176 : vector<8x128xf32> to vector<1x8x128xf32>
      %178 = arith.addf %175, %177 : vector<1x8x128xf32>
      %179 = vector.shape_cast %178 : vector<1x8x128xf32> to vector<8x128xf32>
      %c0_72 = arith.constant 0 : index
      %c0_73 = arith.constant 0 : index
      %180 = vector.load %arg22[%c0_72, %c0_73] : memref<8x128xf32, #tpu.memory_space<vmem>>, vector<8x128xf32>
      tpu.vector_store %arg22[%c0_72, %c0_73], %179 {strides = array<i32>} : memref<8x128xf32, #tpu.memory_space<vmem>>, vector<8x128xf32>,
    } else {
    }
    %c0 = arith.constant 0 : index
    %c0_1 = arith.constant 0 : index
    %3 = vector.load %arg22[%c0, %c0_1] : memref<8x128xf32, #tpu.memory_space<vmem>>, vector<8x128xf32>
    %c0_2 = arith.constant 0 : index
    %c0_3 = arith.constant 0 : index
    %c0_4 = arith.constant 0 : index
    %4 = vector.load %arg5[%c0_2, %c0_3, %c0_4] : memref<1x1x128xf32, #tpu.memory_space<vmem>>, vector<1x1x128xf32>
    %5 = vector.shape_cast %4 : vector<1x1x128xf32> to vector<1x128xf32>
    %c0_5 = arith.constant 0 : index
    %c0_6 = arith.constant 0 : index
    %c0_7 = arith.constant 0 : index
    %6 = vector.load %arg6[%c0_5, %c0_6, %c0_7] : memref<1x1x128xf32, #tpu.memory_space<vmem>>, vector<1x1x128xf32>
    %7 = vector.shape_cast %6 : vector<1x1x128xf32> to vector<1x128xf32>
    %cst = arith.constant dense<0.000000e+00> : vector<8xf32>
    %8 = vector.multi_reduction <add>, %3, %cst [1] : vector<8x128xf32> to vector<8xf32>
    %9 = vector.shape_cast %8 : vector<8xf32> to vector<8x1xf32>
    %cst_8 = arith.constant 1.280000e+02 : f32
    %10 = vector.broadcast %cst_8 : f32 to vector<8x1xf32>
    %11 = arith.divf %9, %10 : vector<8x1xf32>
    %12 = vector.broadcast %11 : vector<8x1xf32> to vector<8x128xf32>
    %13 = arith.subf %3, %12 : vector<8x128xf32>
    %14 = arith.mulf %13, %13 : vector<8x128xf32>
    %cst_9 = arith.constant dense<0.000000e+00> : vector<8xf32>
    %15 = vector.multi_reduction <add>, %14, %cst_9 [1] : vector<8x128xf32> to vector<8xf32>
    %16 = vector.shape_cast %15 : vector<8xf32> to vector<8x1xf32>
    %cst_10 = arith.constant 1.280000e+02 : f32
    %17 = vector.broadcast %cst_10 : f32 to vector<8x1xf32>
    %18 = arith.divf %16, %17 : vector<8x1xf32>
    %19 = vector.broadcast %11 : vector<8x1xf32> to vector<8x128xf32>
    %20 = arith.subf %3, %19 : vector<8x128xf32>
    %cst_11 = arith.constant 9.99999997E-7 : f32
    %21 = vector.broadcast %cst_11 : f32 to vector<8x1xf32>
    %22 = arith.addf %18, %21 : vector<8x1xf32>
    %23 = math.rsqrt %22 : vector<8x1xf32>
    %24 = vector.broadcast %23 : vector<8x1xf32> to vector<8x128xf32>
    %25 = arith.mulf %20, %24 : vector<8x128xf32>
    %26 = vector.broadcast %5 : vector<1x128xf32> to vector<8x128xf32>
    %27 = arith.mulf %25, %26 : vector<8x128xf32>
    %28 = vector.broadcast %7 : vector<1x128xf32> to vector<8x128xf32>
    %29 = arith.addf %27, %28 : vector<8x128xf32>
    %30 = arith.truncf %29 : vector<8x128xf32> to vector<8x128xbf16>
    %c0_12 = arith.constant 0 : index
    %c0_13 = arith.constant 0 : index
    %c0_14 = arith.constant 0 : index
    %31 = vector.load %arg7[%c0_12, %c0_13, %c0_14] : memref<1x128x384xbf16, #tpu.memory_space<vmem>>, vector<1x128x384xbf16>
    %32 = vector.shape_cast %31 : vector<1x128x384xbf16> to vector<128x384xbf16>
    %cst_15 = arith.constant dense<0.000000e+00> : vector<8x384xf32>
    %33 = tpu.matmul %30, %32, %cst_15 {dimension_numbers = #tpu.dot_dimension_numbers<[1], [0], [0], [1], [0, 0, 1, 1], [], []>} : vector<8x128xbf16>, vector<128x384xbf16>, vector<8x384xf32> -> vector<8x384xf32>
    %c0_16 = arith.constant 0 : index
    %c0_17 = arith.constant 0 : index
    %c0_18 = arith.constant 0 : index
    %34 = vector.load %arg8[%c0_16, %c0_17, %c0_18] : memref<1x1x384xf32, #tpu.memory_space<vmem>>, vector<1x1x384xf32>
    %35 = vector.shape_cast %34 : vector<1x1x384xf32> to vector<1x384xf32>
    %36 = vector.broadcast %35 : vector<1x384xf32> to vector<8x384xf32>
    %37 = arith.addf %33, %36 : vector<8x384xf32>
    %38 = tpu.iota {dimensions = array<i32: 2>} : vector<1x1x8xi32>
    %c5_i32 = arith.constant 5 : i32
    %39 = vector.broadcast %c5_i32 : i32 to vector<1x1x8xi32>
    %40 = arith.cmpi slt, %38, %39 : vector<1x1x8xi32>
    %cst_19 = arith.constant 0.000000e+00 : f32
    %cst_20 = arith.constant -1.000000e+30 : f32
    %41 = vector.broadcast %cst_19 : f32 to vector<1x1x8xf32>
    %42 = vector.broadcast %cst_20 : f32 to vector<1x1x8xf32>
    %43 = arith.select %40, %41, %42 : vector<1x1x8xi1>, vector<1x1x8xf32>
    %44 = vector.extract_strided_slice %37 {offsets = [0, 0], sizes = [8, 128], strides = [1, 1]} : vector<8x384xf32> to vector<8x128xf32>
    %45 = vector.extract_strided_slice %44 {offsets = [0, 0], sizes = [8, 32], strides = [1, 1]} : vector<8x128xf32> to vector<8x32xf32>
    %46 = vector.shape_cast %45 : vector<8x32xf32> to vector<1x8x32xf32>
    %47 = vector.extract_strided_slice %44 {offsets = [0, 32], sizes = [8, 32], strides = [1, 1]} : vector<8x128xf32> to vector<8x32xf32>
    %48 = vector.shape_cast %47 : vector<8x32xf32> to vector<1x8x32xf32>
    %49 = vector.extract_strided_slice %44 {offsets = [0, 64], sizes = [8, 32], strides = [1, 1]} : vector<8x128xf32> to vector<8x32xf32>
    %50 = vector.shape_cast %49 : vector<8x32xf32> to vector<1x8x32xf32>
    %51 = vector.extract_strided_slice %44 {offsets = [0, 96], sizes = [8, 32], strides = [1, 1]} : vector<8x128xf32> to vector<8x32xf32>
    %52 = vector.shape_cast %51 : vector<8x32xf32> to vector<1x8x32xf32>
    %53 = tpu.concatenate %46, %48, %50, %52 in 0 : vector<1x8x32xf32>, vector<1x8x32xf32>, vector<1x8x32xf32>, vector<1x8x32xf32> -> vector<4x8x32xf32>
    %54 = vector.extract_strided_slice %37 {offsets = [0, 128], sizes = [8, 128], strides = [1, 1]} : vector<8x384xf32> to vector<8x128xf32>
    %55 = vector.extract_strided_slice %54 {offsets = [0, 0], sizes = [8, 32], strides = [1, 1]} : vector<8x128xf32> to vector<8x32xf32>
    %56 = vector.shape_cast %55 : vector<8x32xf32> to vector<1x8x32xf32>
    %57 = vector.extract_strided_slice %54 {offsets = [0, 32], sizes = [8, 32], strides = [1, 1]} : vector<8x128xf32> to vector<8x32xf32>
    %58 = vector.shape_cast %57 : vector<8x32xf32> to vector<1x8x32xf32>
    %59 = vector.extract_strided_slice %54 {offsets = [0, 64], sizes = [8, 32], strides = [1, 1]} : vector<8x128xf32> to vector<8x32xf32>
    %60 = vector.shape_cast %59 : vector<8x32xf32> to vector<1x8x32xf32>
    %61 = vector.extract_strided_slice %54 {offsets = [0, 96], sizes = [8, 32], strides = [1, 1]} : vector<8x128xf32> to vector<8x32xf32>
    %62 = vector.shape_cast %61 : vector<8x32xf32> to vector<1x8x32xf32>
    %63 = tpu.concatenate %56, %58, %60, %62 in 0 : vector<1x8x32xf32>, vector<1x8x32xf32>, vector<1x8x32xf32>, vector<1x8x32xf32> -> vector<4x8x32xf32>
    %64 = vector.extract_strided_slice %37 {offsets = [0, 256], sizes = [8, 128], strides = [1, 1]} : vector<8x384xf32> to vector<8x128xf32>
    %65 = vector.extract_strided_slice %64 {offsets = [0, 0], sizes = [8, 32], strides = [1, 1]} : vector<8x128xf32> to vector<8x32xf32>
    %66 = vector.shape_cast %65 : vector<8x32xf32> to vector<1x8x32xf32>
    %67 = vector.extract_strided_slice %64 {offsets = [0, 32], sizes = [8, 32], strides = [1, 1]} : vector<8x128xf32> to vector<8x32xf32>
    %68 = vector.shape_cast %67 : vector<8x32xf32> to vector<1x8x32xf32>
    %69 = vector.extract_strided_slice %64 {offsets = [0, 64], sizes = [8, 32], strides = [1, 1]} : vector<8x128xf32> to vector<8x32xf32>
    %70 = vector.shape_cast %69 : vector<8x32xf32> to vector<1x8x32xf32>
    %71 = vector.extract_strided_slice %64 {offsets = [0, 96], sizes = [8, 32], strides = [1, 1]} : vector<8x128xf32> to vector<8x32xf32>
    %72 = vector.shape_cast %71 : vector<8x32xf32> to vector<1x8x32xf32>
    %73 = tpu.concatenate %66, %68, %70, %72 in 0 : vector<1x8x32xf32>, vector<1x8x32xf32>, vector<1x8x32xf32>, vector<1x8x32xf32> -> vector<4x8x32xf32>
    %74 = arith.truncf %53 : vector<4x8x32xf32> to vector<4x8x32xbf16>
    %75 = arith.truncf %63 : vector<4x8x32xf32> to vector<4x8x32xbf16>
    "tpu.trace_start"() <{level = 10 : i32, message = "hqd,hkd->hqk"}> : () -> ()
    %cst_21 = arith.constant dense<0.000000e+00> : vector<4x8x8xf32>
    %76 = tpu.matmul %74, %75, %cst_21 {dimension_numbers = #tpu.dot_dimension_numbers<[2], [2], [1], [1], [0, 0, 0, 1, 1, 1], [0], [0]>} : vector<4x8x32xbf16>, vector<4x8x32xbf16>, vector<4x8x8xf32> -> vector<4x8x8xf32>
    "tpu.trace_stop"() : () -> ()
    %cst_22 = arith.constant 0.176776692 : f32
    %77 = vector.broadcast %cst_22 : f32 to vector<4x8x8xf32>
    %78 = arith.mulf %76, %77 : vector<4x8x8xf32>
    %79 = vector.broadcast %43 : vector<1x1x8xf32> to vector<4x8x8xf32>
    %80 = arith.addf %78, %79 : vector<4x8x8xf32>
    %cst_23 = arith.constant dense<0xFF800000> : vector<4x8xf32>
    %81 = vector.multi_reduction <maximumf>, %80, %cst_23 [2] : vector<4x8x8xf32> to vector<4x8xf32>
    %82 = vector.shape_cast %81 : vector<4x8xf32> to vector<4x8x1xf32>
    %83 = vector.broadcast %82 : vector<4x8x1xf32> to vector<4x8x8xf32>
    %84 = arith.subf %80, %83 : vector<4x8x8xf32>
    %85 = math.exp %84 : vector<4x8x8xf32>
    %cst_24 = arith.constant dense<0.000000e+00> : vector<4x8xf32>
    %86 = vector.multi_reduction <add>, %85, %cst_24 [2] : vector<4x8x8xf32> to vector<4x8xf32>
    %87 = vector.shape_cast %86 : vector<4x8xf32> to vector<4x8x1xf32>
    %88 = arith.truncf %85 : vector<4x8x8xf32> to vector<4x8x8xbf16>
    %89 = arith.truncf %73 : vector<4x8x32xf32> to vector<4x8x32xbf16>
    "tpu.trace_start"() <{level = 10 : i32, message = "hqk,hkd->hqd"}> : () -> ()
    %cst_25 = arith.constant dense<0.000000e+00> : vector<4x8x32xf32>
    %90 = tpu.matmul %88, %89, %cst_25 {dimension_numbers = #tpu.dot_dimension_numbers<[2], [1], [1], [2], [0, 0, 0, 1, 1, 2], [0], [0]>} : vector<4x8x8xbf16>, vector<4x8x32xbf16>, vector<4x8x32xf32> -> vector<4x8x32xf32>
    "tpu.trace_stop"() : () -> ()
    %91 = tpu.reciprocal %87 {approx = true} : vector<4x8x1xf32> -> vector<4x8x1xf32>
    %92 = vector.broadcast %91 : vector<4x8x1xf32> to vector<4x8x32xf32>
    %93 = arith.mulf %90, %92 : vector<4x8x32xf32>
    %94 = vector.extract_strided_slice %93 {offsets = [0, 0, 0], sizes = [1, 8, 32], strides = [1, 1, 1]} : vector<4x8x32xf32> to vector<1x8x32xf32>
    %95 = vector.shape_cast %94 : vector<1x8x32xf32> to vector<8x32xf32>
    %96 = vector.extract_strided_slice %93 {offsets = [1, 0, 0], sizes = [1, 8, 32], strides = [1, 1, 1]} : vector<4x8x32xf32> to vector<1x8x32xf32>
    %97 = vector.shape_cast %96 : vector<1x8x32xf32> to vector<8x32xf32>
    %98 = vector.extract_strided_slice %93 {offsets = [2, 0, 0], sizes = [1, 8, 32], strides = [1, 1, 1]} : vector<4x8x32xf32> to vector<1x8x32xf32>
    %99 = vector.shape_cast %98 : vector<1x8x32xf32> to vector<8x32xf32>
    %100 = vector.extract_strided_slice %93 {offsets = [3, 0, 0], sizes = [1, 8, 32], strides = [1, 1, 1]} : vector<4x8x32xf32> to vector<1x8x32xf32>
    %101 = vector.shape_cast %100 : vector<1x8x32xf32> to vector<8x32xf32>
    %102 = tpu.concatenate %95, %97, %99, %101 in 1 : vector<8x32xf32>, vector<8x32xf32>, vector<8x32xf32>, vector<8x32xf32> -> vector<8x128xf32>
    %103 = arith.truncf %102 : vector<8x128xf32> to vector<8x128xbf16>
    %c0_26 = arith.constant 0 : index
    %c0_27 = arith.constant 0 : index
    %c0_28 = arith.constant 0 : index
    %104 = vector.load %arg9[%c0_26, %c0_27, %c0_28] : memref<1x128x128xbf16, #tpu.memory_space<vmem>>, vector<1x128x128xbf16>
    %105 = vector.shape_cast %104 : vector<1x128x128xbf16> to vector<128x128xbf16>
    %cst_29 = arith.constant dense<0.000000e+00> : vector<8x128xf32>
    %106 = tpu.matmul %103, %105, %cst_29 {dimension_numbers = #tpu.dot_dimension_numbers<[1], [0], [0], [1], [0, 0, 1, 1], [], []>} : vector<8x128xbf16>, vector<128x128xbf16>, vector<8x128xf32> -> vector<8x128xf32>
    %c0_30 = arith.constant 0 : index
    %c0_31 = arith.constant 0 : index
    %c0_32 = arith.constant 0 : index
    %107 = vector.load %arg10[%c0_30, %c0_31, %c0_32] : memref<1x1x128xf32, #tpu.memory_space<vmem>>, vector<1x1x128xf32>
    %108 = vector.shape_cast %107 : vector<1x1x128xf32> to vector<1x128xf32>
    %109 = vector.broadcast %108 : vector<1x128xf32> to vector<8x128xf32>
    %110 = arith.addf %106, %109 : vector<8x128xf32>
    %111 = arith.addf %3, %110 : vector<8x128xf32>
    %c0_33 = arith.constant 0 : index
    %c0_34 = arith.constant 0 : index
    %c0_35 = arith.constant 0 : index
    %112 = vector.load %arg11[%c0_33, %c0_34, %c0_35] : memref<1x1x128xf32, #tpu.memory_space<vmem>>, vector<1x1x128xf32>
    %113 = vector.shape_cast %112 : vector<1x1x128xf32> to vector<1x128xf32>
    %c0_36 = arith.constant 0 : index
    %c0_37 = arith.constant 0 : index
    %c0_38 = arith.constant 0 : index
    %114 = vector.load %arg12[%c0_36, %c0_37, %c0_38] : memref<1x1x128xf32, #tpu.memory_space<vmem>>, vector<1x1x128xf32>
    %115 = vector.shape_cast %114 : vector<1x1x128xf32> to vector<1x128xf32>
    %cst_39 = arith.constant dense<0.000000e+00> : vector<8xf32>
    %116 = vector.multi_reduction <add>, %111, %cst_39 [1] : vector<8x128xf32> to vector<8xf32>
    %117 = vector.shape_cast %116 : vector<8xf32> to vector<8x1xf32>
    %cst_40 = arith.constant 1.280000e+02 : f32
    %118 = vector.broadcast %cst_40 : f32 to vector<8x1xf32>
    %119 = arith.divf %117, %118 : vector<8x1xf32>
    %120 = vector.broadcast %119 : vector<8x1xf32> to vector<8x128xf32>
    %121 = arith.subf %111, %120 : vector<8x128xf32>
    %122 = arith.mulf %121, %121 : vector<8x128xf32>
    %cst_41 = arith.constant dense<0.000000e+00> : vector<8xf32>
    %123 = vector.multi_reduction <add>, %122, %cst_41 [1] : vector<8x128xf32> to vector<8xf32>
    %124 = vector.shape_cast %123 : vector<8xf32> to vector<8x1xf32>
    %cst_42 = arith.constant 1.280000e+02 : f32
    %125 = vector.broadcast %cst_42 : f32 to vector<8x1xf32>
    %126 = arith.divf %124, %125 : vector<8x1xf32>
    %127 = vector.broadcast %119 : vector<8x1xf32> to vector<8x128xf32>
    %128 = arith.subf %111, %127 : vector<8x128xf32>
    %cst_43 = arith.constant 9.99999997E-7 : f32
    %129 = vector.broadcast %cst_43 : f32 to vector<8x1xf32>
    %130 = arith.addf %126, %129 : vector<8x1xf32>
    %131 = math.rsqrt %130 : vector<8x1xf32>
    %132 = vector.broadcast %131 : vector<8x1xf32> to vector<8x128xf32>
    %133 = arith.mulf %128, %132 : vector<8x128xf32>
    %134 = vector.broadcast %113 : vector<1x128xf32> to vector<8x128xf32>
    %135 = arith.mulf %133, %134 : vector<8x128xf32>
    %136 = vector.broadcast %115 : vector<1x128xf32> to vector<8x128xf32>
    %137 = arith.addf %135, %136 : vector<8x128xf32>
    %138 = arith.truncf %137 : vector<8x128xf32> to vector<8x128xbf16>
    %c0_44 = arith.constant 0 : index
    %c0_45 = arith.constant 0 : index
    %c0_46 = arith.constant 0 : index
    %139 = vector.load %arg13[%c0_44, %c0_45, %c0_46] : memref<1x128x512xbf16, #tpu.memory_space<vmem>>, vector<1x128x512xbf16>
    %140 = vector.shape_cast %139 : vector<1x128x512xbf16> to vector<128x512xbf16>
    %cst_47 = arith.constant dense<0.000000e+00> : vector<8x512xf32>
    %141 = tpu.matmul %138, %140, %cst_47 {dimension_numbers = #tpu.dot_dimension_numbers<[1], [0], [0], [1], [0, 0, 1, 1], [], []>} : vector<8x128xbf16>, vector<128x512xbf16>, vector<8x512xf32> -> vector<8x512xf32>
    %c0_48 = arith.constant 0 : index
    %c0_49 = arith.constant 0 : index
    %c0_50 = arith.constant 0 : index
    %142 = vector.load %arg14[%c0_48, %c0_49, %c0_50] : memref<1x1x512xf32, #tpu.memory_space<vmem>>, vector<1x1x512xf32>
    %143 = vector.shape_cast %142 : vector<1x1x512xf32> to vector<1x512xf32>
    %144 = vector.broadcast %143 : vector<1x512xf32> to vector<8x512xf32>
    %145 = arith.addf %141, %144 : vector<8x512xf32>
    %146 = arith.mulf %145, %145 : vector<8x512xf32>
    %147 = arith.mulf %145, %146 : vector<8x512xf32>
    %cst_51 = arith.constant 4.471500e-02 : f32
    %148 = vector.broadcast %cst_51 : f32 to vector<8x512xf32>
    %149 = arith.mulf %148, %147 : vector<8x512xf32>
    %150 = arith.addf %145, %149 : vector<8x512xf32>
    %cst_52 = arith.constant 0.797884583 : f32
    %151 = vector.broadcast %cst_52 : f32 to vector<8x512xf32>
    %152 = arith.mulf %151, %150 : vector<8x512xf32>
    %153 = math.tanh %152 : vector<8x512xf32>
    %cst_53 = arith.constant 1.000000e+00 : f32
    %154 = vector.broadcast %cst_53 : f32 to vector<8x512xf32>
    %155 = arith.addf %154, %153 : vector<8x512xf32>
    %cst_54 = arith.constant 5.000000e-01 : f32
    %156 = vector.broadcast %cst_54 : f32 to vector<8x512xf32>
    %157 = arith.mulf %156, %155 : vector<8x512xf32>
    %158 = arith.mulf %145, %157 : vector<8x512xf32>
    %159 = arith.truncf %158 : vector<8x512xf32> to vector<8x512xbf16>
    %c0_55 = arith.constant 0 : index
    %c0_56 = arith.constant 0 : index
    %c0_57 = arith.constant 0 : index
    %160 = vector.load %arg15[%c0_55, %c0_56, %c0_57] : memref<1x512x128xbf16, #tpu.memory_space<vmem>>, vector<1x512x128xbf16>
    %161 = vector.shape_cast %160 : vector<1x512x128xbf16> to vector<512x128xbf16>
    %cst_58 = arith.constant dense<0.000000e+00> : vector<8x128xf32>
    %162 = tpu.matmul %159, %161, %cst_58 {dimension_numbers = #tpu.dot_dimension_numbers<[1], [0], [0], [1], [0, 0, 1, 1], [], []>} : vector<8x512xbf16>, vector<512x128xbf16>, vector<8x128xf32> -> vector<8x128xf32>
    %c0_59 = arith.constant 0 : index
    %c0_60 = arith.constant 0 : index
    %c0_61 = arith.constant 0 : index
    %163 = vector.load %arg16[%c0_59, %c0_60, %c0_61] : memref<1x1x128xf32, #tpu.memory_space<vmem>>, vector<1x1x128xf32>
    %164 = vector.shape_cast %163 : vector<1x1x128xf32> to vector<1x128xf32>
    %165 = vector.broadcast %164 : vector<1x128xf32> to vector<8x128xf32>
    %166 = arith.addf %162, %165 : vector<8x128xf32>
    %167 = arith.addf %111, %166 : vector<8x128xf32>
    %c0_62 = arith.constant 0 : index
    %c0_63 = arith.constant 0 : index
    %168 = vector.load %arg22[%c0_62, %c0_63] : memref<8x128xf32, #tpu.memory_space<vmem>>, vector<8x128xf32>
    tpu.vector_store %arg22[%c0_62, %c0_63], %167 {strides = array<i32>} : memref<8x128xf32, #tpu.memory_space<vmem>>, vector<8x128xf32>,
    %c1_i32 = arith.constant 1 : i32
    %169 = arith.cmpi eq, %arg1, %c1_i32 : i32
    %170 = arith.extui %169 : i1 to i32
    %c0_i32_64 = arith.constant 0 : i32
    %171 = arith.cmpi ne, %170, %c0_i32_64 : i32
    scf.if %171 {
      %172 = vector.shape_cast %167 : vector<8x128xf32> to vector<1x8x128xf32>
      %173 = vector.extract_strided_slice %172 {offsets = [0, 0, 0], sizes = [1, 1, 128], strides = [1, 1, 1]} : vector<1x8x128xf32> to vector<1x1x128xf32>
      %174 = vector.shape_cast %173 : vector<1x1x128xf32> to vector<1x128xf32>
      %c0_65 = arith.constant 0 : index
      %c0_66 = arith.constant 0 : index
      %175 = vector.load %arg17[%c0_65, %c0_66] : memref<1x128xf32, #tpu.memory_space<vmem>>, vector<1x128xf32>
      %c0_67 = arith.constant 0 : index
      %c0_68 = arith.constant 0 : index
      %176 = vector.load %arg18[%c0_67, %c0_68] : memref<1x128xf32, #tpu.memory_space<vmem>>, vector<1x128xf32>
      %cst_69 = arith.constant dense<0.000000e+00> : vector<1xf32>
      %177 = vector.multi_reduction <add>, %174, %cst_69 [1] : vector<1x128xf32> to vector<1xf32>
      %178 = vector.shape_cast %177 : vector<1xf32> to vector<1x1xf32>
      %cst_70 = arith.constant 1.280000e+02 : f32
      %179 = vector.broadcast %cst_70 : f32 to vector<1x1xf32>
      %180 = arith.divf %178, %179 : vector<1x1xf32>
      %181 = vector.broadcast %180 : vector<1x1xf32> to vector<1x128xf32>
      %182 = arith.subf %174, %181 : vector<1x128xf32>
      %183 = arith.mulf %182, %182 : vector<1x128xf32>
      %cst_71 = arith.constant dense<0.000000e+00> : vector<1xf32>
      %184 = vector.multi_reduction <add>, %183, %cst_71 [1] : vector<1x128xf32> to vector<1xf32>
      %185 = vector.shape_cast %184 : vector<1xf32> to vector<1x1xf32>
      %cst_72 = arith.constant 1.280000e+02 : f32
      %186 = vector.broadcast %cst_72 : f32 to vector<1x1xf32>
      %187 = arith.divf %185, %186 : vector<1x1xf32>
      %188 = vector.broadcast %180 : vector<1x1xf32> to vector<1x128xf32>
      %189 = arith.subf %174, %188 : vector<1x128xf32>
      %cst_73 = arith.constant 9.99999997E-7 : f32
      %190 = vector.broadcast %cst_73 : f32 to vector<1x1xf32>
      %191 = arith.addf %187, %190 : vector<1x1xf32>
      %192 = math.rsqrt %191 : vector<1x1xf32>
      %193 = vector.broadcast %192 : vector<1x1xf32> to vector<1x128xf32>
      %194 = arith.mulf %189, %193 : vector<1x128xf32>
      %195 = arith.mulf %194, %175 : vector<1x128xf32>
      %196 = arith.addf %195, %176 : vector<1x128xf32>
      %197 = arith.truncf %196 : vector<1x128xf32> to vector<1x128xbf16>
      %c0_74 = arith.constant 0 : index
      %c0_75 = arith.constant 0 : index
      %198 = vector.load %arg19[%c0_74, %c0_75] : memref<128x128xbf16, #tpu.memory_space<vmem>>, vector<128x128xbf16>
      %cst_76 = arith.constant dense<0.000000e+00> : vector<1x128xf32>
      %199 = tpu.matmul %197, %198, %cst_76 {dimension_numbers = #tpu.dot_dimension_numbers<[1], [0], [0], [1], [0, 0, 1, 1], [], []>} : vector<1x128xbf16>, vector<128x128xbf16>, vector<1x128xf32> -> vector<1x128xf32>
      %c0_77 = arith.constant 0 : index
      %c0_78 = arith.constant 0 : index
      %200 = vector.load %arg20[%c0_77, %c0_78] : memref<1x128xf32, #tpu.memory_space<vmem>>, vector<1x128xf32>
      %201 = arith.addf %199, %200 : vector<1x128xf32>
      %c0_79 = arith.constant 0 : index
      %c0_80 = arith.constant 0 : index
      %c0_81 = arith.constant 0 : index
      %202 = vector.load %arg21[%c0_79, %c0_80, %c0_81] : memref<1x1x128xf32, #tpu.memory_space<vmem>>, vector<1x1x128xf32>
      %203 = vector.shape_cast %202 : vector<1x1x128xf32> to vector<1x128xf32>
      %204 = vector.shape_cast %201 : vector<1x128xf32> to vector<1x1x128xf32>
      tpu.vector_store %arg21[%c0_79, %c0_80, %c0_81], %204 {strides = array<i32>} : memref<1x1x128xf32, #tpu.memory_space<vmem>>, vector<1x1x128xf32>,
    } else {
    }
    return
  }
  func.func @transform_0(%arg0: i32, %arg1: i32) -> (i32, i32) {
    %c0_i32 = arith.constant 0 : i32
    %c0_i32_0 = arith.constant 0 : i32
    return %arg0, %c0_i32 : i32, i32
  }
  func.func @transform_1(%arg0: i32, %arg1: i32) -> (i32, i32) {
    %c0_i32 = arith.constant 0 : i32
    %c0_i32_0 = arith.constant 0 : i32
    %c0_i32_1 = arith.constant 0 : i32
    return %c0_i32, %c0_i32_0 : i32, i32
  }
  func.func @transform_2(%arg0: i32, %arg1: i32) -> (i32, i32) {
    %c0_i32 = arith.constant 0 : i32
    %c0_i32_0 = arith.constant 0 : i32
    %c0_i32_1 = arith.constant 0 : i32
    return %c0_i32, %c0_i32_0 : i32, i32
  }
  func.func @transform_3(%arg0: i32, %arg1: i32) -> (i32, i32, i32) {
    %c0_i32 = arith.constant 0 : i32
    %c0_i32_0 = arith.constant 0 : i32
    %c0_i32_1 = arith.constant 0 : i32
    return %arg1, %c0_i32, %c0_i32_0 : i32, i32, i32
  }
  func.func @transform_4(%arg0: i32, %arg1: i32) -> (i32, i32, i32) {
    %c0_i32 = arith.constant 0 : i32
    %c0_i32_0 = arith.constant 0 : i32
    %c0_i32_1 = arith.constant 0 : i32
    return %arg1, %c0_i32, %c0_i32_0 : i32, i32, i32
  }
  func.func @transform_5(%arg0: i32, %arg1: i32) -> (i32, i32, i32) {
    %c0_i32 = arith.constant 0 : i32
    %c0_i32_0 = arith.constant 0 : i32
    %c0_i32_1 = arith.constant 0 : i32
    return %arg1, %c0_i32, %c0_i32_0 : i32, i32, i32
  }
  func.func @transform_6(%arg0: i32, %arg1: i32) -> (i32, i32, i32) {
    %c0_i32 = arith.constant 0 : i32
    %c0_i32_0 = arith.constant 0 : i32
    %c0_i32_1 = arith.constant 0 : i32
    return %arg1, %c0_i32, %c0_i32_0 : i32, i32, i32
  }
  func.func @transform_7(%arg0: i32, %arg1: i32) -> (i32, i32, i32) {
    %c0_i32 = arith.constant 0 : i32
    %c0_i32_0 = arith.constant 0 : i32
    %c0_i32_1 = arith.constant 0 : i32
    return %arg1, %c0_i32, %c0_i32_0 : i32, i32, i32
  }
  func.func @transform_8(%arg0: i32, %arg1: i32) -> (i32, i32, i32) {
    %c0_i32 = arith.constant 0 : i32
    %c0_i32_0 = arith.constant 0 : i32
    %c0_i32_1 = arith.constant 0 : i32
    return %arg1, %c0_i32, %c0_i32_0 : i32, i32, i32
  }
  func.func @transform_9(%arg0: i32, %arg1: i32) -> (i32, i32, i32) {
    %c0_i32 = arith.constant 0 : i32
    %c0_i32_0 = arith.constant 0 : i32
    %c0_i32_1 = arith.constant 0 : i32
    return %arg1, %c0_i32, %c0_i32_0 : i32, i32, i32
  }
  func.func @transform_10(%arg0: i32, %arg1: i32) -> (i32, i32, i32) {
    %c0_i32 = arith.constant 0 : i32
    %c0_i32_0 = arith.constant 0 : i32
    %c0_i32_1 = arith.constant 0 : i32
    return %arg1, %c0_i32, %c0_i32_0 : i32, i32, i32
  }
  func.func @transform_11(%arg0: i32, %arg1: i32) -> (i32, i32, i32) {
    %c0_i32 = arith.constant 0 : i32
    %c0_i32_0 = arith.constant 0 : i32
    %c0_i32_1 = arith.constant 0 : i32
    return %arg1, %c0_i32, %c0_i32_0 : i32, i32, i32
  }
  func.func @transform_12(%arg0: i32, %arg1: i32) -> (i32, i32, i32) {
    %c0_i32 = arith.constant 0 : i32
    %c0_i32_0 = arith.constant 0 : i32
    %c0_i32_1 = arith.constant 0 : i32
    return %arg1, %c0_i32, %c0_i32_0 : i32, i32, i32
  }
  func.func @transform_13(%arg0: i32, %arg1: i32) -> (i32, i32, i32) {
    %c0_i32 = arith.constant 0 : i32
    %c0_i32_0 = arith.constant 0 : i32
    %c0_i32_1 = arith.constant 0 : i32
    return %arg1, %c0_i32, %c0_i32_0 : i32, i32, i32
  }
  func.func @transform_14(%arg0: i32, %arg1: i32) -> (i32, i32, i32) {
    %c0_i32 = arith.constant 0 : i32
    %c0_i32_0 = arith.constant 0 : i32
    %c0_i32_1 = arith.constant 0 : i32
    return %arg1, %c0_i32, %c0_i32_0 : i32, i32, i32
  }
  func.func @transform_15(%arg0: i32, %arg1: i32) -> (i32, i32) {
    %c0_i32 = arith.constant 0 : i32
    %c0_i32_0 = arith.constant 0 : i32
    %c0_i32_1 = arith.constant 0 : i32
    return %c0_i32, %c0_i32_0 : i32, i32
  }
  func.func @transform_16(%arg0: i32, %arg1: i32) -> (i32, i32) {
    %c0_i32 = arith.constant 0 : i32
    %c0_i32_0 = arith.constant 0 : i32
    %c0_i32_1 = arith.constant 0 : i32
    return %c0_i32, %c0_i32_0 : i32, i32
  }
  func.func @transform_17(%arg0: i32, %arg1: i32) -> (i32, i32) {
    %c0_i32 = arith.constant 0 : i32
    %c0_i32_0 = arith.constant 0 : i32
    %c0_i32_1 = arith.constant 0 : i32
    return %c0_i32, %c0_i32_0 : i32, i32
  }
  func.func @transform_18(%arg0: i32, %arg1: i32) -> (i32, i32) {
    %c0_i32 = arith.constant 0 : i32
    %c0_i32_0 = arith.constant 0 : i32
    %c0_i32_1 = arith.constant 0 : i32
    return %c0_i32, %c0_i32_0 : i32, i32
  }
  func.func @transform_19(%arg0: i32, %arg1: i32) -> (i32, i32, i32) {
    %c0_i32 = arith.constant 0 : i32
    %c0_i32_0 = arith.constant 0 : i32
    %c0_i32_1 = arith.constant 0 : i32
    return %arg0, %c0_i32, %c0_i32_0 : i32, i32, i32
  }
}

</mosaic_0001>

<llo_original>
// kernel: vit_forward.1
$region0: #{vit_forward.1}
  #allocation0 [shape = 'u32[]', space=smem, size = 0x4, offset = 0x4, fixed_abs, tag = 'smem constant byte address 0x4 - core index']
  #allocation1 [shape = 'u32[72,128]{1,0:T(1,128)}', space=vmem, size = 0x9000, scoped, tag = 'internal scratch']
  #allocation2 [shape = 'f32[8,128]{1,0:T(8,128)}', space=vmem, size = 0x1000, scoped, tag = 'scratch operand']
  %s0 = inlined_call_operand.vmem [shape: bf16[16,256], index: 0, kind: input, shape index: {}]
  %s1 = inlined_call_operand.vmem [shape: f32[8,128], index: 1, kind: input, shape index: {}]
  %s2 = inlined_call_operand.hbm [shape: bf16[256,128], index: 2, kind: input, shape index: {}]
  %s3 = inlined_call_operand.vmem [shape: f32[2,1,128], index: 3, kind: input, shape index: {}]
  %s4 = inlined_call_operand.vmem [shape: f32[2,1,128], index: 4, kind: input, shape index: {}]
  %s5 = inlined_call_operand.vmem [shape: bf16[2,128,384], index: 5, kind: input, shape index: {}]
  %s6 = inlined_call_operand.vmem [shape: f32[2,1,384], index: 6, kind: input, shape index: {}]
  %s7 = inlined_call_operand.hbm [shape: bf16[2,128,128], index: 7, kind: input, shape index: {}]
  %s8 = inlined_call_operand.vmem [shape: f32[2,1,128], index: 8, kind: input, shape index: {}]
  %s9 = inlined_call_operand.vmem [shape: f32[2,1,128], index: 9, kind: input, shape index: {}]
  %s10 = inlined_call_operand.vmem [shape: f32[2,1,128], index: 10, kind: input, shape index: {}]
  %s11 = inlined_call_operand.hbm [shape: bf16[2,128,512], index: 11, kind: input, shape index: {}]
  %s12 = inlined_call_operand.vmem [shape: f32[2,1,512], index: 12, kind: input, shape index: {}]
  %s13 = inlined_call_operand.hbm [shape: bf16[2,512,128], index: 13, kind: input, shape index: {}]
  %s14 = inlined_call_operand.vmem [shape: f32[2,1,128], index: 14, kind: input, shape index: {}]
  %s15 = inlined_call_operand.vmem [shape: f32[1,128], index: 15, kind: input, shape index: {}]
  %s16 = inlined_call_operand.vmem [shape: f32[1,128], index: 16, kind: input, shape index: {}]
  %s17 = inlined_call_operand.hbm [shape: bf16[128,128], index: 17, kind: input, shape index: {}]
  %s18 = inlined_call_operand.vmem [shape: f32[1,128], index: 18, kind: input, shape index: {}]
  %s19 = inlined_call_operand.hbm [shape: f32[2,1,128], index: 19, kind: output, shape index: {}]
  %s20 = sld [smem:[#allocation0]]
  $region137: #{vit_forward.1} parent=0
    _
  %s22 = ssub.s32 1, %s20
  %s23 = scalar_select 0, %s22, %s20
  $region1: #{vit_forward.1} parent=0
    #allocation3 [shape = 'u8[65536]{0}', space=vmem, size = 0x10000, scoped, tag = 'input window, operand 2, single buffered']
    #allocation4 [shape = 's32[2]{0}', space=sflag, size = 0x8, scoped, tag = 'scoped memory for vit_forward.1']
    #allocation5 [shape = 's32[2]{0}', space=sflag, size = 0x8, scoped, tag = 'scoped memory for vit_forward.1']
    #allocation6 [shape = 'u8[65536]{0}', space=vmem, size = 0x10000, scoped, tag = 'input window, operand 7']
    #allocation7 [shape = 's32[2]{0}', space=sflag, size = 0x8, scoped, tag = 'scoped memory for vit_forward.1']
    #allocation8 [shape = 'u8[262144]{0}', space=vmem, size = 0x40000, scoped, tag = 'input window, operand 11']
    #allocation9 [shape = 'u8[262144]{0}', space=vmem, size = 0x40000, scoped, tag = 'input window, operand 13']
    #allocation10 [shape = 's32[2]{0}', space=sflag, size = 0x8, scoped, tag = 'scoped memory for vit_forward.1']
    #allocation11 [shape = 'u8[32768]{0}', space=vmem, size = 0x8000, scoped, tag = 'input window, operand 17, single buffered']
    #allocation12 [shape = 'u8[1024]{0}', space=vmem, size = 0x400, scoped, tag = 'output window, operand 0']
    %24 = vsyncpa [#allocation4], 0
    %25 = vsyncpa [#allocation7], 0
    %s26 = scalar_lea.sflag [#allocation7], 1
    %27 = vsyncpa %s26, 0
    %28 = vsyncpa [#allocation10], 0
    %s29 = scalar_lea.sflag [#allocation10], 1
    %30 = vsyncpa %s29, 0
    %31 = vsyncpa [#allocation5], 0
    %s32 = scalar_lea.sflag [#allocation5], 1
    %33 = vsyncpa %s32, 0
    loop: start=0, step=1, limit=6
    $region2: #{vit_forward.1} parent=1 // loop_pre_header
      _
    $region3: #{vit_forward.1} parent=1 // loop_header
      %s35 = sphi 0, %s39
      %p36 = scmp.ge.s32.totalorder %s35, 6
      %s42 = sphi 0, %s54
      %s43 = sphi 0, %s50
      %s44 = sphi 0, %s42
      %s45 = sphi 0, %s43
      %s46 = sphi 0, %s44
      %s47 = sphi 0, %s45
      %s57 = sphi 0, %s59
      %s60 = sphi 0, %s57
      %s61 = sphi 0, %s60
      %s77 = sphi 0, %s61
      %s81 = sphi 0, %s81
      %s83 = sphi 0, %s81
      %s84 = sphi 0, %s83
      %s98 = sphi 0, %s84
      %s102 = sphi 0, %s102
      %s104 = sphi 0, %s102
      %s105 = sphi 0, %s104
      %s119 = sphi 0, %s105
      %s125 = sphi 0, %s127
      %s128 = sphi 0, %s125
      %s129 = sphi 0, %s128
      %s145 = sphi 0, %s129
      %s151 = sphi 0, %s153
      %s154 = sphi 0, %s151
      %s155 = sphi 0, %s154
      %s171 = sphi 0, %s155
      %s177 = sphi 0, %s179
      %s180 = sphi 0, %s177
      %s181 = sphi 0, %s180
      %s197 = sphi 0, %s181
      %s203 = sphi 0, %s205
      %s206 = sphi 0, %s203
      %s207 = sphi 0, %s206
      %s223 = sphi 0, %s207
      %s229 = sphi 0, %s231
      %s232 = sphi 0, %s229
      %s233 = sphi 0, %s232
      %s249 = sphi 0, %s233
      %s255 = sphi 0, %s257
      %s258 = sphi 0, %s255
      %s259 = sphi 0, %s258
      %s275 = sphi 0, %s259
      %s281 = sphi 0, %s283
      %s284 = sphi 0, %s281
      %s285 = sphi 0, %s284
      %s301 = sphi 0, %s285
      %s307 = sphi 0, %s309
      %s310 = sphi 0, %s307
      %s311 = sphi 0, %s310
      %s327 = sphi 0, %s311
      %s333 = sphi 0, %s335
      %s336 = sphi 0, %s333
      %s337 = sphi 0, %s336
      %s353 = sphi 0, %s337
      %s359 = sphi 0, %s361
      %s362 = sphi 0, %s359
      %s363 = sphi 0, %s362
      %s379 = sphi 0, %s363
      %s385 = sphi 0, %s387
      %s388 = sphi 0, %s385
      %s389 = sphi 0, %s388
      %s405 = sphi 0, %s389
      %s411 = sphi 0, %s413
      %s414 = sphi 0, %s411
      %s415 = sphi 0, %s414
      %s431 = sphi 0, %s415
      %s435 = sphi 0, %s435
      %s437 = sphi 0, %s435
      %s438 = sphi 0, %s437
      %s452 = sphi 0, %s438
      %s456 = sphi 0, %s456
      %s458 = sphi 0, %s456
      %s459 = sphi 0, %s458
      %s473 = sphi 0, %s459
      %s477 = sphi 0, %s477
      %s479 = sphi 0, %s477
      %s480 = sphi 0, %s479
      %s494 = sphi 0, %s480
      %s498 = sphi 0, %s498
      %s500 = sphi 0, %s498
      %s501 = sphi 0, %s500
      %s515 = sphi 0, %s501
      %s521 = sphi 0, %s523
      %s524 = sphi 0, %s521
      %s525 = sphi 0, %s524
      %s541 = sphi 0, %s525
    $region4: #{vit_forward.1} parent=1 // loop_header_branch
      %38 = sbr.rel (%p36) target = $region8
    $region5: #{vit_forward.1} parent=1 // loop_body
      %s40 = ssub.s32 %s35, 1
      %s41 = ssub.s32 %s35, 2
      %s48 = sadd.s32 1, %s43
      %p49 = scmp.ge.s32.totalorder %s48, 2
      %s50 = scalar_select %p49, 0, %s48
      %s51 = sadd.s32 1, %s42
      %s52 = scalar_select %p49, %s51, %s42
      %p53 = scmp.ge.s32.totalorder %s52, 2
      %s54 = scalar_select %p53, 0, %s52
      %s55 = ssub.s32 %s42, %s54
      %p56 = scmp.eq.s32.totalorder %s55, 0
      %s58 = sadd.s32 %s57, 1
      %s59 = scalar_select %p56, %s57, %s58
      %p62 = pneg %p56
      %p63 = scmp.eq.s32.totalorder %s35, 3
      %p64 = por %p62, %p63
      %p65 = scmp.ne.s32.totalorder %s57, %s60
      %p66 = scmp.eq.s32.totalorder %s35, 0
      %p67 = por %p65, %p66
      %p68 = scmp.ne.s32.totalorder %s57, %s60
      %p69 = scmp.eq.s32.totalorder %s40, 3
      %p70 = por %p68, %p69
      %p71 = scmp.ne.s32.totalorder %s60, %s61
      %p72 = scmp.eq.s32.totalorder %s40, 0
      %p73 = por %p71, %p72
      %p74 = scmp.ne.s32.totalorder %s60, %s61
      %p75 = scmp.eq.s32.totalorder %s41, 3
      %p76 = por %p74, %p75
      %p78 = scmp.ne.s32.totalorder %s61, %s77
      %p79 = scmp.eq.s32.totalorder %s41, 0
      %p80 = por %p78, %p79
      %s82 = sadd.s32 %s81, 1
      %p85 = scmp.eq.s32.totalorder %s35, 3
      %p86 = scmp.ne.s32.totalorder %s81, %s83
      %p87 = scmp.eq.s32.totalorder %s35, 0
      %p88 = por %p86, %p87
      %p89 = scmp.ne.s32.totalorder %s81, %s83
      %p90 = scmp.eq.s32.totalorder %s40, 3
      %p91 = por %p89, %p90
      %p92 = scmp.ne.s32.totalorder %s83, %s84
      %p93 = scmp.eq.s32.totalorder %s40, 0
      %p94 = por %p92, %p93
      %p95 = scmp.ne.s32.totalorder %s83, %s84
      %p96 = scmp.eq.s32.totalorder %s41, 3
      %p97 = por %p95, %p96
      %p99 = scmp.ne.s32.totalorder %s84, %s98
      %p100 = scmp.eq.s32.totalorder %s41, 0
      %p101 = por %p99, %p100
      %s103 = sadd.s32 %s102, 1
      %p106 = scmp.eq.s32.totalorder %s35, 3
      %p107 = scmp.ne.s32.totalorder %s102, %s104
      %p108 = scmp.eq.s32.totalorder %s35, 0
      %p109 = por %p107, %p108
      %p110 = scmp.ne.s32.totalorder %s102, %s104
      %p111 = scmp.eq.s32.totalorder %s40, 3
      %p112 = por %p110, %p111
      %p113 = scmp.ne.s32.totalorder %s104, %s105
      %p114 = scmp.eq.s32.totalorder %s40, 0
      %p115 = por %p113, %p114
      %p116 = scmp.ne.s32.totalorder %s104, %s105
      %p117 = scmp.eq.s32.totalorder %s41, 3
      %p118 = por %p116, %p117
      %p120 = scmp.ne.s32.totalorder %s105, %s119
      %p121 = scmp.eq.s32.totalorder %s41, 0
      %p122 = por %p120, %p121
      %s123 = ssub.s32 %s43, %s50
      %p124 = scmp.eq.s32.totalorder %s123, 0
      %s126 = sadd.s32 %s125, 1
      %s127 = scalar_select %p124, %s125, %s126
      %p130 = pneg %p124
      %p131 = scmp.eq.s32.totalorder %s35, 3
      %p132 = por %p130, %p131
      %p133 = scmp.ne.s32.totalorder %s125, %s128
      %p134 = scmp.eq.s32.totalorder %s35, 0
      %p135 = por %p133, %p134
      %p136 = scmp.ne.s32.totalorder %s125, %s128
      %p137 = scmp.eq.s32.totalorder %s40, 3
      %p138 = por %p136, %p137
      %p139 = scmp.ne.s32.totalorder %s128, %s129
      %p140 = scmp.eq.s32.totalorder %s40, 0
      %p141 = por %p139, %p140
      %p142 = scmp.ne.s32.totalorder %s128, %s129
      %p143 = scmp.eq.s32.totalorder %s41, 3
      %p144 = por %p142, %p143
      %p146 = scmp.ne.s32.totalorder %s129, %s145
      %p147 = scmp.eq.s32.totalorder %s41, 0
      %p148 = por %p146, %p147
      %s149 = ssub.s32 %s43, %s50
      %p150 = scmp.eq.s32.totalorder %s149, 0
      %s152 = sadd.s32 %s151, 1
      %s153 = scalar_select %p150, %s151, %s152
      %p156 = pneg %p150
      %p157 = scmp.eq.s32.totalorder %s35, 3
      %p158 = por %p156, %p157
      %p159 = scmp.ne.s32.totalorder %s151, %s154
      %p160 = scmp.eq.s32.totalorder %s35, 0
      %p161 = por %p159, %p160
      %p162 = scmp.ne.s32.totalorder %s151, %s154
      %p163 = scmp.eq.s32.totalorder %s40, 3
      %p164 = por %p162, %p163
      %p165 = scmp.ne.s32.totalorder %s154, %s155
      %p166 = scmp.eq.s32.totalorder %s40, 0
      %p167 = por %p165, %p166
      %p168 = scmp.ne.s32.totalorder %s154, %s155
      %p169 = scmp.eq.s32.totalorder %s41, 3
      %p170 = por %p168, %p169
      %p172 = scmp.ne.s32.totalorder %s155, %s171
      %p173 = scmp.eq.s32.totalorder %s41, 0
      %p174 = por %p172, %p173
      %s175 = ssub.s32 %s43, %s50
      %p176 = scmp.eq.s32.totalorder %s175, 0
      %s178 = sadd.s32 %s177, 1
      %s179 = scalar_select %p176, %s177, %s178
      %p182 = pneg %p176
      %p183 = scmp.eq.s32.totalorder %s35, 3
      %p184 = por %p182, %p183
      %p185 = scmp.ne.s32.totalorder %s177, %s180
      %p186 = scmp.eq.s32.totalorder %s35, 0
      %p187 = por %p185, %p186
      %p188 = scmp.ne.s32.totalorder %s177, %s180
      %p189 = scmp.eq.s32.totalorder %s40, 3
      %p190 = por %p188, %p189
      %p191 = scmp.ne.s32.totalorder %s180, %s181
      %p192 = scmp.eq.s32.totalorder %s40, 0
      %p193 = por %p191, %p192
      %p194 = scmp.ne.s32.totalorder %s180, %s181
      %p195 = scmp.eq.s32.totalorder %s41, 3
      %p196 = por %p194, %p195
      %p198 = scmp.ne.s32.totalorder %s181, %s197
      %p199 = scmp.eq.s32.totalorder %s41, 0
      %p200 = por %p198, %p199
      %s201 = ssub.s32 %s43, %s50
      %p202 = scmp.eq.s32.totalorder %s201, 0
      %s204 = sadd.s32 %s203, 1
      %s205 = scalar_select %p202, %s203, %s204
      %p208 = pneg %p202
      %p209 = scmp.eq.s32.totalorder %s35, 3
      %p210 = por %p208, %p209
      %p211 = scmp.ne.s32.totalorder %s203, %s206
      %p212 = scmp.eq.s32.totalorder %s35, 0
      %p213 = por %p211, %p212
      %p214 = scmp.ne.s32.totalorder %s203, %s206
      %p215 = scmp.eq.s32.totalorder %s40, 3
      %p216 = por %p214, %p215
      %p217 = scmp.ne.s32.totalorder %s206, %s207
      %p218 = scmp.eq.s32.totalorder %s40, 0
      %p219 = por %p217, %p218
      %p220 = scmp.ne.s32.totalorder %s206, %s207
      %p221 = scmp.eq.s32.totalorder %s41, 3
      %p222 = por %p220, %p221
      %p224 = scmp.ne.s32.totalorder %s207, %s223
      %p225 = scmp.eq.s32.totalorder %s41, 0
      %p226 = por %p224, %p225
      %s227 = ssub.s32 %s43, %s50
      %p228 = scmp.eq.s32.totalorder %s227, 0
      %s230 = sadd.s32 %s229, 1
      %s231 = scalar_select %p228, %s229, %s230
      %p234 = pneg %p228
      %p235 = scmp.eq.s32.totalorder %s35, 3
      %p236 = por %p234, %p235
      %p237 = scmp.ne.s32.totalorder %s229, %s232
      %p238 = scmp.eq.s32.totalorder %s35, 0
      %p239 = por %p237, %p238
      %p240 = scmp.ne.s32.totalorder %s229, %s232
      %p241 = scmp.eq.s32.totalorder %s40, 3
      %p242 = por %p240, %p241
      %p243 = scmp.ne.s32.totalorder %s232, %s233
      %p244 = scmp.eq.s32.totalorder %s40, 0
      %p245 = por %p243, %p244
      %p246 = scmp.ne.s32.totalorder %s232, %s233
      %p247 = scmp.eq.s32.totalorder %s41, 3
      %p248 = por %p246, %p247
      %p250 = scmp.ne.s32.totalorder %s233, %s249
      %p251 = scmp.eq.s32.totalorder %s41, 0
      %p252 = por %p250, %p251
      %s253 = ssub.s32 %s43, %s50
      %p254 = scmp.eq.s32.totalorder %s253, 0
      %s256 = sadd.s32 %s255, 1
      %s257 = scalar_select %p254, %s255, %s256
      %p260 = pneg %p254
      %p261 = scmp.eq.s32.totalorder %s35, 3
      %p262 = por %p260, %p261
      %p263 = scmp.ne.s32.totalorder %s255, %s258
      %p264 = scmp.eq.s32.totalorder %s35, 0
      %p265 = por %p263, %p264
      %p266 = scmp.ne.s32.totalorder %s255, %s258
      %p267 = scmp.eq.s32.totalorder %s40, 3
      %p268 = por %p266, %p267
      %p269 = scmp.ne.s32.totalorder %s258, %s259
      %p270 = scmp.eq.s32.totalorder %s40, 0
      %p271 = por %p269, %p270
      %p272 = scmp.ne.s32.totalorder %s258, %s259
      %p273 = scmp.eq.s32.totalorder %s41, 3
      %p274 = por %p272, %p273
      %p276 = scmp.ne.s32.totalorder %s259, %s275
      %p277 = scmp.eq.s32.totalorder %s41, 0
      %p278 = por %p276, %p277
      %s279 = ssub.s32 %s43, %s50
      %p280 = scmp.eq.s32.totalorder %s279, 0
      %s282 = sadd.s32 %s281, 1
      %s283 = scalar_select %p280, %s281, %s282
      %p286 = pneg %p280
      %p287 = scmp.eq.s32.totalorder %s35, 3
      %p288 = por %p286, %p287
      %p289 = scmp.ne.s32.totalorder %s281, %s284
      %p290 = scmp.eq.s32.totalorder %s35, 0
      %p291 = por %p289, %p290
      %p292 = scmp.ne.s32.totalorder %s281, %s284
      %p293 = scmp.eq.s32.totalorder %s40, 3
      %p294 = por %p292, %p293
      %p295 = scmp.ne.s32.totalorder %s284, %s285
      %p296 = scmp.eq.s32.totalorder %s40, 0
      %p297 = por %p295, %p296
      %p298 = scmp.ne.s32.totalorder %s284, %s285
      %p299 = scmp.eq.s32.totalorder %s41, 3
      %p300 = por %p298, %p299
      %p302 = scmp.ne.s32.totalorder %s285, %s301
      %p303 = scmp.eq.s32.totalorder %s41, 0
      %p304 = por %p302, %p303
      %s305 = ssub.s32 %s43, %s50
      %p306 = scmp.eq.s32.totalorder %s305, 0
      %s308 = sadd.s32 %s307, 1
      %s309 = scalar_select %p306, %s307, %s308
      %p312 = pneg %p306
      %p313 = scmp.eq.s32.totalorder %s35, 3
      %p314 = por %p312, %p313
      %p315 = scmp.ne.s32.totalorder %s307, %s310
      %p316 = scmp.eq.s32.totalorder %s35, 0
      %p317 = por %p315, %p316
      %p318 = scmp.ne.s32.totalorder %s307, %s310
      %p319 = scmp.eq.s32.totalorder %s40, 3
      %p320 = por %p318, %p319
      %p321 = scmp.ne.s32.totalorder %s310, %s311
      %p322 = scmp.eq.s32.totalorder %s40, 0
      %p323 = por %p321, %p322
      %p324 = scmp.ne.s32.totalorder %s310, %s311
      %p325 = scmp.eq.s32.totalorder %s41, 3
      %p326 = por %p324, %p325
      %p328 = scmp.ne.s32.totalorder %s311, %s327
      %p329 = scmp.eq.s32.totalorder %s41, 0
      %p330 = por %p328, %p329
      %s331 = ssub.s32 %s43, %s50
      %p332 = scmp.eq.s32.totalorder %s331, 0
      %s334 = sadd.s32 %s333, 1
      %s335 = scalar_select %p332, %s333, %s334
      %p338 = pneg %p332
      %p339 = scmp.eq.s32.totalorder %s35, 3
      %p340 = por %p338, %p339
      %p341 = scmp.ne.s32.totalorder %s333, %s336
      %p342 = scmp.eq.s32.totalorder %s35, 0
      %p343 = por %p341, %p342
      %p344 = scmp.ne.s32.totalorder %s333, %s336
      %p345 = scmp.eq.s32.totalorder %s40, 3
      %p346 = por %p344, %p345
      %p347 = scmp.ne.s32.totalorder %s336, %s337
      %p348 = scmp.eq.s32.totalorder %s40, 0
      %p349 = por %p347, %p348
      %p350 = scmp.ne.s32.totalorder %s336, %s337
      %p351 = scmp.eq.s32.totalorder %s41, 3
      %p352 = por %p350, %p351
      %p354 = scmp.ne.s32.totalorder %s337, %s353
      %p355 = scmp.eq.s32.totalorder %s41, 0
      %p356 = por %p354, %p355
      %s357 = ssub.s32 %s43, %s50
      %p358 = scmp.eq.s32.totalorder %s357, 0
      %s360 = sadd.s32 %s359, 1
      %s361 = scalar_select %p358, %s359, %s360
      %p364 = pneg %p358
      %p365 = scmp.eq.s32.totalorder %s35, 3
      %p366 = por %p364, %p365
      %p367 = scmp.ne.s32.totalorder %s359, %s362
      %p368 = scmp.eq.s32.totalorder %s35, 0
      %p369 = por %p367, %p368
      %p370 = scmp.ne.s32.totalorder %s359, %s362
      %p371 = scmp.eq.s32.totalorder %s40, 3
      %p372 = por %p370, %p371
      %p373 = scmp.ne.s32.totalorder %s362, %s363
      %p374 = scmp.eq.s32.totalorder %s40, 0
      %p375 = por %p373, %p374
      %p376 = scmp.ne.s32.totalorder %s362, %s363
      %p377 = scmp.eq.s32.totalorder %s41, 3
      %p378 = por %p376, %p377
      %p380 = scmp.ne.s32.totalorder %s363, %s379
      %p381 = scmp.eq.s32.totalorder %s41, 0
      %p382 = por %p380, %p381
      %s383 = ssub.s32 %s43, %s50
      %p384 = scmp.eq.s32.totalorder %s383, 0
      %s386 = sadd.s32 %s385, 1
      %s387 = scalar_select %p384, %s385, %s386
      %p390 = pneg %p384
      %p391 = scmp.eq.s32.totalorder %s35, 3
      %p392 = por %p390, %p391
      %p393 = scmp.ne.s32.totalorder %s385, %s388
      %p394 = scmp.eq.s32.totalorder %s35, 0
      %p395 = por %p393, %p394
      %p396 = scmp.ne.s32.totalorder %s385, %s388
      %p397 = scmp.eq.s32.totalorder %s40, 3
      %p398 = por %p396, %p397
      %p399 = scmp.ne.s32.totalorder %s388, %s389
      %p400 = scmp.eq.s32.totalorder %s40, 0
      %p401 = por %p399, %p400
      %p402 = scmp.ne.s32.totalorder %s388, %s389
      %p403 = scmp.eq.s32.totalorder %s41, 3
      %p404 = por %p402, %p403
      %p406 = scmp.ne.s32.totalorder %s389, %s405
      %p407 = scmp.eq.s32.totalorder %s41, 0
      %p408 = por %p406, %p407
      %s409 = ssub.s32 %s43, %s50
      %p410 = scmp.eq.s32.totalorder %s409, 0
      %s412 = sadd.s32 %s411, 1
      %s413 = scalar_select %p410, %s411, %s412
      %p416 = pneg %p410
      %p417 = scmp.eq.s32.totalorder %s35, 3
      %p418 = por %p416, %p417
      %p419 = scmp.ne.s32.totalorder %s411, %s414
      %p420 = scmp.eq.s32.totalorder %s35, 0
      %p421 = por %p419, %p420
      %p422 = scmp.ne.s32.totalorder %s411, %s414
      %p423 = scmp.eq.s32.totalorder %s40, 3
      %p424 = por %p422, %p423
      %p425 = scmp.ne.s32.totalorder %s414, %s415
      %p426 = scmp.eq.s32.totalorder %s40, 0
      %p427 = por %p425, %p426
      %p428 = scmp.ne.s32.totalorder %s414, %s415
      %p429 = scmp.eq.s32.totalorder %s41, 3
      %p430 = por %p428, %p429
      %p432 = scmp.ne.s32.totalorder %s415, %s431
      %p433 = scmp.eq.s32.totalorder %s41, 0
      %p434 = por %p432, %p433
      %s436 = sadd.s32 %s435, 1
      %p439 = scmp.eq.s32.totalorder %s35, 3
      %p440 = scmp.ne.s32.totalorder %s435, %s437
      %p441 = scmp.eq.s32.totalorder %s35, 0
      %p442 = por %p440, %p441
      %p443 = scmp.ne.s32.totalorder %s435, %s437
      %p444 = scmp.eq.s32.totalorder %s40, 3
      %p445 = por %p443, %p444
      %p446 = scmp.ne.s32.totalorder %s437, %s438
      %p447 = scmp.eq.s32.totalorder %s40, 0
      %p448 = por %p446, %p447
      %p449 = scmp.ne.s32.totalorder %s437, %s438
      %p450 = scmp.eq.s32.totalorder %s41, 3
      %p451 = por %p449, %p450
      %p453 = scmp.ne.s32.totalorder %s438, %s452
      %p454 = scmp.eq.s32.totalorder %s41, 0
      %p455 = por %p453, %p454
      %s457 = sadd.s32 %s456, 1
      %p460 = scmp.eq.s32.totalorder %s35, 3
      %p461 = scmp.ne.s32.totalorder %s456, %s458
      %p462 = scmp.eq.s32.totalorder %s35, 0
      %p463 = por %p461, %p462
      %p464 = scmp.ne.s32.totalorder %s456, %s458
      %p465 = scmp.eq.s32.totalorder %s40, 3
      %p466 = por %p464, %p465
      %p467 = scmp.ne.s32.totalorder %s458, %s459
      %p468 = scmp.eq.s32.totalorder %s40, 0
      %p469 = por %p467, %p468
      %p470 = scmp.ne.s32.totalorder %s458, %s459
      %p471 = scmp.eq.s32.totalorder %s41, 3
      %p472 = por %p470, %p471
      %p474 = scmp.ne.s32.totalorder %s459, %s473
      %p475 = scmp.eq.s32.totalorder %s41, 0
      %p476 = por %p474, %p475
      %s478 = sadd.s32 %s477, 1
      %p481 = scmp.eq.s32.totalorder %s35, 3
      %p482 = scmp.ne.s32.totalorder %s477, %s479
      %p483 = scmp.eq.s32.totalorder %s35, 0
      %p484 = por %p482, %p483
      %p485 = scmp.ne.s32.totalorder %s477, %s479
      %p486 = scmp.eq.s32.totalorder %s40, 3
      %p487 = por %p485, %p486
      %p488 = scmp.ne.s32.totalorder %s479, %s480
      %p489 = scmp.eq.s32.totalorder %s40, 0
      %p490 = por %p488, %p489
      %p491 = scmp.ne.s32.totalorder %s479, %s480
      %p492 = scmp.eq.s32.totalorder %s41, 3
      %p493 = por %p491, %p492
      %p495 = scmp.ne.s32.totalorder %s480, %s494
      %p496 = scmp.eq.s32.totalorder %s41, 0
      %p497 = por %p495, %p496
      %s499 = sadd.s32 %s498, 1
      %p502 = scmp.eq.s32.totalorder %s35, 3
      %p503 = scmp.ne.s32.totalorder %s498, %s500
      %p504 = scmp.eq.s32.totalorder %s35, 0
      %p505 = por %p503, %p504
      %p506 = scmp.ne.s32.totalorder %s498, %s500
      %p507 = scmp.eq.s32.totalorder %s40, 3
      %p508 = por %p506, %p507
      %p509 = scmp.ne.s32.totalorder %s500, %s501
      %p510 = scmp.eq.s32.totalorder %s40, 0
      %p511 = por %p509, %p510
      %p512 = scmp.ne.s32.totalorder %s500, %s501
      %p513 = scmp.eq.s32.totalorder %s41, 3
      %p514 = por %p512, %p513
      %p516 = scmp.ne.s32.totalorder %s501, %s515
      %p517 = scmp.eq.s32.totalorder %s41, 0
      %p518 = por %p516, %p517
      %s519 = ssub.s32 %s42, %s54
      %p520 = scmp.eq.s32.totalorder %s519, 0
      %s522 = sadd.s32 %s521, 1
      %s523 = scalar_select %p520, %s521, %s522
      %p526 = pneg %p520
      %p527 = scmp.eq.s32.totalorder %s35, 3
      %p528 = por %p526, %p527
      %p529 = scmp.ne.s32.totalorder %s521, %s524
      %p530 = scmp.eq.s32.totalorder %s35, 0
      %p531 = por %p529, %p530
      %p532 = scmp.ne.s32.totalorder %s521, %s524
      %p533 = scmp.eq.s32.totalorder %s40, 3
      %p534 = por %p532, %p533
      %p535 = scmp.ne.s32.totalorder %s524, %s525
      %p536 = scmp.eq.s32.totalorder %s40, 0
      %p537 = por %p535, %p536
      %p538 = scmp.ne.s32.totalorder %s524, %s525
      %p539 = scmp.eq.s32.totalorder %s41, 3
      %p540 = por %p538, %p539
      %p542 = scmp.ne.s32.totalorder %s525, %s541
      %p543 = scmp.eq.s32.totalorder %s41, 0
      %p544 = por %p542, %p543
      %p545 = scmp.le.s32.totalorder 1, %s35
      %p546 = scmp.lt.s32.totalorder %s35, 5
      %p547 = pnand %p545, %p546
      %p548 = pneg %p547
      // Predicated region
      $region9: #{vit_forward.1} parent=5 // pred_check
        _
      $region10: #{vit_forward.1} parent=5 // pred_check_branch
        %550 = sbr.rel (%p547) target = $region12
      $region11: #{vit_forward.1} parent=5 // pred_region
        %s551 = ssub.s32 %s35, 1
        // Predicated region
        $region13: #{vit_forward.1} parent=11 // pred_check
          %p552 = pneg %p94
        $region14: #{vit_forward.1} parent=11 // pred_check_branch
          %554 = sbr.rel (%p552) target = $region16
        $region15: #{vit_forward.1} parent=11 // pred_region
          _
        $region16: #{vit_forward.1} parent=11 // pred_fallthru
          _
        // Predicated region
        $region17: #{vit_forward.1} parent=11 // pred_check
          %p555 = pneg %p115
        $region18: #{vit_forward.1} parent=11 // pred_check_branch
          %557 = sbr.rel (%p555) target = $region20
        $region19: #{vit_forward.1} parent=11 // pred_region
          %559 = vsyncadd [#allocation4], 0
          %s560 = sshll.u32 %s2, 4
          %s561 = int_to_ptr.hbm [resolvable:$true] %s560
          %s562 = sshll.u32 [#allocation3], 4
          %s563 = int_to_ptr.vmem [resolvable:$true] %s562
          %568 = dma.hbm_to_vmem [thread:$0]  %s561, 2048, %s563, [#allocation4], 64, 64, 4
        $region20: #{vit_forward.1} parent=11 // pred_fallthru
          _
        // Predicated region
        $region21: #{vit_forward.1} parent=11 // pred_check
          %p569 = pneg %p448
        $region22: #{vit_forward.1} parent=11 // pred_check_branch
          %571 = sbr.rel (%p569) target = $region24
        $region23: #{vit_forward.1} parent=11 // pred_region
          _
        $region24: #{vit_forward.1} parent=11 // pred_fallthru
          _
        // Predicated region
        $region25: #{vit_forward.1} parent=11 // pred_check
          %p572 = pneg %p469
        $region26: #{vit_forward.1} parent=11 // pred_check_branch
          %574 = sbr.rel (%p572) target = $region28
        $region27: #{vit_forward.1} parent=11 // pred_region
          _
        $region28: #{vit_forward.1} parent=11 // pred_fallthru
          _
        // Predicated region
        $region29: #{vit_forward.1} parent=11 // pred_check
          %p575 = pneg %p490
        $region30: #{vit_forward.1} parent=11 // pred_check_branch
          %577 = sbr.rel (%p575) target = $region32
        $region31: #{vit_forward.1} parent=11 // pred_region
          %579 = vsyncadd [#allocation10], 0
          %s580 = sshll.u32 %s17, 4
          %s581 = int_to_ptr.hbm [resolvable:$true] %s580
          %s582 = sshll.u32 [#allocation11], 4
          %s583 = int_to_ptr.vmem [resolvable:$true] %s582
          %588 = dma.hbm_to_vmem [thread:$0]  %s581, 1024, %s583, [#allocation10], 64, 64, 4
        $region32: #{vit_forward.1} parent=11 // pred_fallthru
          _
        // Predicated region
        $region33: #{vit_forward.1} parent=11 // pred_check
          %p589 = pneg %p511
        $region34: #{vit_forward.1} parent=11 // pred_check_branch
          %591 = sbr.rel (%p589) target = $region36
        $region35: #{vit_forward.1} parent=11 // pred_region
          _
        $region36: #{vit_forward.1} parent=11 // pred_fallthru
          _
      $region12: #{vit_forward.1} parent=5 // pred_fallthru
        _
      %p592 = scmp.lt.s32.totalorder %s35, 4
      // Predicated region
      $region37: #{vit_forward.1} parent=5 // pred_check
        %p593 = pneg %p592
      $region38: #{vit_forward.1} parent=5 // pred_check_branch
        %595 = sbr.rel (%p593) target = $region40
      $region39: #{vit_forward.1} parent=5 // pred_region
        // Predicated region
        $region41: #{vit_forward.1} parent=39 // pred_check
          %p596 = pneg %p67
        $region42: #{vit_forward.1} parent=39 // pred_check_branch
          %598 = sbr.rel (%p596) target = $region44
        $region43: #{vit_forward.1} parent=39 // pred_region
          %p599 = scmp.lt.s32.totalorder %s42, 1
          %s600 = scalar_select %p599, %s42, 1
          %s601 = smul.addr %s600, 2
          %s602 = smul.addr %s601, 4
          %s603 = scalar_lea.vmem %s0, %s602
        $region44: #{vit_forward.1} parent=39 // pred_fallthru
          _
        // Predicated region
        $region45: #{vit_forward.1} parent=39 // pred_check
          %p604 = pneg %p135
        $region46: #{vit_forward.1} parent=39 // pred_check_branch
          %606 = sbr.rel (%p604) target = $region48
        $region47: #{vit_forward.1} parent=39 // pred_region
          %p607 = scmp.lt.s32.totalorder %s43, 1
          %s608 = scalar_select %p607, %s43, 1
          %s609 = scalar_lea.vmem %s3, %s608
        $region48: #{vit_forward.1} parent=39 // pred_fallthru
          _
        // Predicated region
        $region49: #{vit_forward.1} parent=39 // pred_check
          %p610 = pneg %p161
        $region50: #{vit_forward.1} parent=39 // pred_check_branch
          %612 = sbr.rel (%p610) target = $region52
        $region51: #{vit_forward.1} parent=39 // pred_region
          %p613 = scmp.lt.s32.totalorder %s43, 1
          %s614 = scalar_select %p613, %s43, 1
          %s615 = scalar_lea.vmem %s4, %s614
        $region52: #{vit_forward.1} parent=39 // pred_fallthru
          _
        // Predicated region
        $region53: #{vit_forward.1} parent=39 // pred_check
          %p616 = pneg %p187
        $region54: #{vit_forward.1} parent=39 // pred_check_branch
          %618 = sbr.rel (%p616) target = $region56
        $region55: #{vit_forward.1} parent=39 // pred_region
          %p619 = scmp.lt.s32.totalorder %s43, 1
          %s620 = scalar_select %p619, %s43, 1
          %s621 = smul.addr %s620, 48
          %s622 = smul.addr %s621, 4
          %s623 = scalar_lea.vmem %s5, %s622
        $region56: #{vit_forward.1} parent=39 // pred_fallthru
          _
        // Predicated region
        $region57: #{vit_forward.1} parent=39 // pred_check
          %p624 = pneg %p213
        $region58: #{vit_forward.1} parent=39 // pred_check_branch
          %626 = sbr.rel (%p624) target = $region60
        $region59: #{vit_forward.1} parent=39 // pred_region
          %p627 = scmp.lt.s32.totalorder %s43, 1
          %s628 = scalar_select %p627, %s43, 1
          %s629 = smul.addr %s628, 3
          %s630 = scalar_lea.vmem %s6, %s629
        $region60: #{vit_forward.1} parent=39 // pred_fallthru
          _
        // Predicated region
        $region61: #{vit_forward.1} parent=39 // pred_check
          %p631 = pneg %p239
        $region62: #{vit_forward.1} parent=39 // pred_check_branch
          %633 = sbr.rel (%p631) target = $region64
        $region63: #{vit_forward.1} parent=39 // pred_region
          %s634 = sand.u32 %s35, 1
          %s635 = scalar_lea.sflag [#allocation7], %s634
          %s636 = sand.u32 %s229, 1
          %s637 = smul.addr %s636, 64
          %s638 = scalar_lea.vmem [#allocation6], %s637
          %640 = vsyncadd %s635, 0
          %s641 = smul.addr %s43, 16
          %s642 = smul.addr %s641, 4
          %s643 = scalar_lea.hbm %s7, %s642
          %s644 = sshll.u32 %s643, 4
          %s645 = int_to_ptr.hbm [resolvable:$true] %s644
          %s646 = sshll.u32 %s638, 4
          %s647 = int_to_ptr.vmem [resolvable:$true] %s646
          %652 = dma.hbm_to_vmem [thread:$0]  %s645, 1024, %s647, %s635, 64, 64, 4
        $region64: #{vit_forward.1} parent=39 // pred_fallthru
          _
        // Predicated region
        $region65: #{vit_forward.1} parent=39 // pred_check
          %p653 = pneg %p265
        $region66: #{vit_forward.1} parent=39 // pred_check_branch
          %655 = sbr.rel (%p653) target = $region68
        $region67: #{vit_forward.1} parent=39 // pred_region
          %p656 = scmp.lt.s32.totalorder %s43, 1
          %s657 = scalar_select %p656, %s43, 1
          %s658 = scalar_lea.vmem %s8, %s657
        $region68: #{vit_forward.1} parent=39 // pred_fallthru
          _
        // Predicated region
        $region69: #{vit_forward.1} parent=39 // pred_check
          %p659 = pneg %p291
        $region70: #{vit_forward.1} parent=39 // pred_check_branch
          %661 = sbr.rel (%p659) target = $region72
        $region71: #{vit_forward.1} parent=39 // pred_region
          %p662 = scmp.lt.s32.totalorder %s43, 1
          %s663 = scalar_select %p662, %s43, 1
          %s664 = scalar_lea.vmem %s9, %s663
        $region72: #{vit_forward.1} parent=39 // pred_fallthru
          _
        // Predicated region
        $region73: #{vit_forward.1} parent=39 // pred_check
          %p665 = pneg %p317
        $region74: #{vit_forward.1} parent=39 // pred_check_branch
          %667 = sbr.rel (%p665) target = $region76
        $region75: #{vit_forward.1} parent=39 // pred_region
          %p668 = scmp.lt.s32.totalorder %s43, 1
          %s669 = scalar_select %p668, %s43, 1
          %s670 = scalar_lea.vmem %s10, %s669
        $region76: #{vit_forward.1} parent=39 // pred_fallthru
          _
        // Predicated region
        $region77: #{vit_forward.1} parent=39 // pred_check
          %p671 = pneg %p343
        $region78: #{vit_forward.1} parent=39 // pred_check_branch
          %673 = sbr.rel (%p671) target = $region80
        $region79: #{vit_forward.1} parent=39 // pred_region
          %s674 = sand.u32 %s35, 1
          %s675 = scalar_lea.sflag [#allocation7], %s674
          %s676 = sand.u32 %s333, 1
          %s677 = smul.addr %s676, 256
          %s678 = scalar_lea.vmem [#allocation8], %s677
          %680 = vsyncadd %s675, 0
          %s681 = smul.addr %s43, 64
          %s682 = smul.addr %s681, 4
          %s683 = scalar_lea.hbm %s11, %s682
          %s684 = sshll.u32 %s683, 4
          %s685 = int_to_ptr.hbm [resolvable:$true] %s684
          %s686 = sshll.u32 %s678, 4
          %s687 = int_to_ptr.vmem [resolvable:$true] %s686
          %692 = dma.hbm_to_vmem [thread:$0]  %s685, 4096, %s687, %s675, 256, 256, 16
        $region80: #{vit_forward.1} parent=39 // pred_fallthru
          _
        // Predicated region
        $region81: #{vit_forward.1} parent=39 // pred_check
          %p693 = pneg %p369
        $region82: #{vit_forward.1} parent=39 // pred_check_branch
          %695 = sbr.rel (%p693) target = $region84
        $region83: #{vit_forward.1} parent=39 // pred_region
          %p696 = scmp.lt.s32.totalorder %s43, 1
          %s697 = scalar_select %p696, %s43, 1
          %s698 = smul.addr %s697, 4
          %s699 = scalar_lea.vmem %s12, %s698
        $region84: #{vit_forward.1} parent=39 // pred_fallthru
          _
        // Predicated region
        $region85: #{vit_forward.1} parent=39 // pred_check
          %p700 = pneg %p395
        $region86: #{vit_forward.1} parent=39 // pred_check_branch
          %702 = sbr.rel (%p700) target = $region88
        $region87: #{vit_forward.1} parent=39 // pred_region
          %s703 = sand.u32 %s35, 1
          %s704 = scalar_lea.sflag [#allocation10], %s703
          %s705 = sand.u32 %s385, 1
          %s706 = smul.addr %s705, 256
          %s707 = scalar_lea.vmem [#allocation9], %s706
          %709 = vsyncadd %s704, 0
          %s710 = smul.addr %s43, 64
          %s711 = smul.addr %s710, 4
          %s712 = scalar_lea.hbm %s13, %s711
          %s713 = sshll.u32 %s712, 4
          %s714 = int_to_ptr.hbm [resolvable:$true] %s713
          %s715 = sshll.u32 %s707, 4
          %s716 = int_to_ptr.vmem [resolvable:$true] %s715
          %721 = dma.hbm_to_vmem [thread:$0]  %s714, 4096, %s716, %s704, 64, 64, 4
        $region88: #{vit_forward.1} parent=39 // pred_fallthru
          _
        // Predicated region
        $region89: #{vit_forward.1} parent=39 // pred_check
          %p722 = pneg %p421
        $region90: #{vit_forward.1} parent=39 // pred_check_branch
          %724 = sbr.rel (%p722) target = $region92
        $region91: #{vit_forward.1} parent=39 // pred_region
          %p725 = scmp.lt.s32.totalorder %s43, 1
          %s726 = scalar_select %p725, %s43, 1
          %s727 = scalar_lea.vmem %s14, %s726
        $region92: #{vit_forward.1} parent=39 // pred_fallthru
          _
      $region40: #{vit_forward.1} parent=5 // pred_fallthru
        _
      %p728 = scmp.le.s32.totalorder 1, %s35
      %p729 = scmp.lt.s32.totalorder %s35, 5
      %p730 = pnand %p728, %p729
      %p731 = pneg %p730
      // Predicated region
      $region93: #{vit_forward.1} parent=5 // pred_check
        _
      $region94: #{vit_forward.1} parent=5 // pred_check_branch
        %733 = sbr.rel (%p730) target = $region96
      $region95: #{vit_forward.1} parent=5 // pred_region
        %s734 = ssub.s32 %s35, 1
        // Predicated region
        $region97: #{vit_forward.1} parent=95 // pred_check
          %p735 = pneg %p115
        $region98: #{vit_forward.1} parent=95 // pred_check_branch
          %737 = sbr.rel (%p735) target = $region100
        $region99: #{vit_forward.1} parent=95 // pred_region
          %739 = dma.done [#allocation4], 2048
        $region100: #{vit_forward.1} parent=95 // pred_fallthru
          _
        %s740 = sand.u32 %s40, 1
        %s741 = scalar_lea.sflag [#allocation7], %s740
        %s742 = sand.u32 %s232, 1
        %s743 = smul.addr %s742, 64
        %s744 = scalar_lea.vmem [#allocation6], %s743
        // Predicated region
        $region101: #{vit_forward.1} parent=95 // pred_check
          %p745 = pneg %p245
        $region102: #{vit_forward.1} parent=95 // pred_check_branch
          %747 = sbr.rel (%p745) target = $region104
        $region103: #{vit_forward.1} parent=95 // pred_region
          %749 = dma.done %s741, 1024
        $region104: #{vit_forward.1} parent=95 // pred_fallthru
          _
        %s750 = sand.u32 %s40, 1
        %s751 = scalar_lea.sflag [#allocation7], %s750
        %s752 = sand.u32 %s336, 1
        %s753 = smul.addr %s752, 256
        %s754 = scalar_lea.vmem [#allocation8], %s753
        // Predicated region
        $region105: #{vit_forward.1} parent=95 // pred_check
          %p755 = pneg %p349
        $region106: #{vit_forward.1} parent=95 // pred_check_branch
          %757 = sbr.rel (%p755) target = $region108
        $region107: #{vit_forward.1} parent=95 // pred_region
          %759 = dma.done %s751, 4096
        $region108: #{vit_forward.1} parent=95 // pred_fallthru
          _
        %s760 = sand.u32 %s40, 1
        %s761 = scalar_lea.sflag [#allocation10], %s760
        %s762 = sand.u32 %s388, 1
        %s763 = smul.addr %s762, 256
        %s764 = scalar_lea.vmem [#allocation9], %s763
        // Predicated region
        $region109: #{vit_forward.1} parent=95 // pred_check
          %p765 = pneg %p401
        $region110: #{vit_forward.1} parent=95 // pred_check_branch
          %767 = sbr.rel (%p765) target = $region112
        $region111: #{vit_forward.1} parent=95 // pred_region
          %769 = dma.done %s761, 4096
        $region112: #{vit_forward.1} parent=95 // pred_fallthru
          _
        // Predicated region
        $region113: #{vit_forward.1} parent=95 // pred_check
          %p770 = pneg %p490
        $region114: #{vit_forward.1} parent=95 // pred_check_branch
          %772 = sbr.rel (%p770) target = $region116
        $region115: #{vit_forward.1} parent=95 // pred_region
          %774 = dma.done [#allocation10], 1024
        $region116: #{vit_forward.1} parent=95 // pred_fallthru
          _
        %p775 = scmp.lt.s32.totalorder %s44, 1
        %s776 = scalar_select %p775, %s44, 1
        %s777 = smul.addr %s776, 2
        %s778 = smul.addr %s777, 4
        %s779 = scalar_lea.vmem %s0, %s778
        %p780 = pneg %p73
        %p781 = pneg %p70
        %p782 = pneg %p94
        %p783 = pneg %p91
        %p784 = pneg %p115
        %p785 = pneg %p112
        %p786 = scmp.lt.s32.totalorder %s45, 1
        %s787 = scalar_select %p786, %s45, 1
        %s788 = scalar_lea.vmem %s3, %s787
        %p789 = pneg %p141
        %p790 = pneg %p138
        %p791 = scmp.lt.s32.totalorder %s45, 1
        %s792 = scalar_select %p791, %s45, 1
        %s793 = scalar_lea.vmem %s4, %s792
        %p794 = pneg %p167
        %p795 = pneg %p164
        %p796 = scmp.lt.s32.totalorder %s45, 1
        %s797 = scalar_select %p796, %s45, 1
        %s798 = smul.addr %s797, 48
        %s799 = smul.addr %s798, 4
        %s800 = scalar_lea.vmem %s5, %s799
        %p801 = pneg %p193
        %p802 = pneg %p190
        %p803 = scmp.lt.s32.totalorder %s45, 1
        %s804 = scalar_select %p803, %s45, 1
        %s805 = smul.addr %s804, 3
        %s806 = scalar_lea.vmem %s6, %s805
        %p807 = pneg %p219
        %p808 = pneg %p216
        %s809 = sand.u32 %s40, 1
        %s810 = scalar_lea.sflag [#allocation7], %s809
        %s811 = sand.u32 %s232, 1
        %s812 = smul.addr %s811, 64
        %s813 = scalar_lea.vmem [#allocation6], %s812
        %p814 = pneg %p245
        %p815 = pneg %p242
        %p816 = scmp.lt.s32.totalorder %s45, 1
        %s817 = scalar_select %p816, %s45, 1
        %s818 = scalar_lea.vmem %s8, %s817
        %p819 = pneg %p271
        %p820 = pneg %p268
        %p821 = scmp.lt.s32.totalorder %s45, 1
        %s822 = scalar_select %p821, %s45, 1
        %s823 = scalar_lea.vmem %s9, %s822
        %p824 = pneg %p297
        %p825 = pneg %p294
        %p826 = scmp.lt.s32.totalorder %s45, 1
        %s827 = scalar_select %p826, %s45, 1
        %s828 = scalar_lea.vmem %s10, %s827
        %p829 = pneg %p323
        %p830 = pneg %p320
        %s831 = sand.u32 %s40, 1
        %s832 = scalar_lea.sflag [#allocation7], %s831
        %s833 = sand.u32 %s336, 1
        %s834 = smul.addr %s833, 256
        %s835 = scalar_lea.vmem [#allocation8], %s834
        %p836 = pneg %p349
        %p837 = pneg %p346
        %p838 = scmp.lt.s32.totalorder %s45, 1
        %s839 = scalar_select %p838, %s45, 1
        %s840 = smul.addr %s839, 4
        %s841 = scalar_lea.vmem %s12, %s840
        %p842 = pneg %p375
        %p843 = pneg %p372
        %s844 = sand.u32 %s40, 1
        %s845 = scalar_lea.sflag [#allocation10], %s844
        %s846 = sand.u32 %s388, 1
        %s847 = smul.addr %s846, 256
        %s848 = scalar_lea.vmem [#allocation9], %s847
        %p849 = pneg %p401
        %p850 = pneg %p398
        %p851 = scmp.lt.s32.totalorder %s45, 1
        %s852 = scalar_select %p851, %s45, 1
        %s853 = scalar_lea.vmem %s14, %s852
        %p854 = pneg %p427
        %p855 = pneg %p424
        %p856 = pneg %p448
        %p857 = pneg %p445
        %p858 = pneg %p469
        %p859 = pneg %p466
        %p860 = pneg %p490
        %p861 = pneg %p487
        %p862 = pneg %p511
        %p863 = pneg %p508
        %p864 = pneg %p537
        %p865 = pneg %p534
        %s866 = sand.u32 %s524, 1
        %s867 = scalar_lea.sflag [#allocation5], %s866
        %s868 = sand.u32 %s524, 1
        %s869 = scalar_lea.vmem [#allocation12], %s868
        %p870 = scmp.lt.s32.totalorder %s44, 1
        %s871 = scalar_select %p870, %s44, 1
        %s872 = smul.addr %s871, 2
        %s873 = smul.addr %s872, 4
        %s874 = scalar_lea.vmem %s0, %s873
        %p875 = scmp.lt.s32.totalorder %s45, 1
        %s876 = scalar_select %p875, %s45, 1
        %s877 = scalar_lea.vmem %s3, %s876
        %p878 = scmp.lt.s32.totalorder %s45, 1
        %s879 = scalar_select %p878, %s45, 1
        %s880 = scalar_lea.vmem %s4, %s879
        %p881 = scmp.lt.s32.totalorder %s45, 1
        %s882 = scalar_select %p881, %s45, 1
        %s883 = smul.addr %s882, 48
        %s884 = smul.addr %s883, 4
        %s885 = scalar_lea.vmem %s5, %s884
        %p886 = scmp.lt.s32.totalorder %s45, 1
        %s887 = scalar_select %p886, %s45, 1
        %s888 = smul.addr %s887, 3
        %s889 = scalar_lea.vmem %s6, %s888
        %p890 = scmp.lt.s32.totalorder %s45, 1
        %s891 = scalar_select %p890, %s45, 1
        %s892 = scalar_lea.vmem %s8, %s891
        %p893 = scmp.lt.s32.totalorder %s45, 1
        %s894 = scalar_select %p893, %s45, 1
        %s895 = scalar_lea.vmem %s9, %s894
        %p896 = scmp.lt.s32.totalorder %s45, 1
        %s897 = scalar_select %p896, %s45, 1
        %s898 = scalar_lea.vmem %s10, %s897
        %p899 = scmp.lt.s32.totalorder %s45, 1
        %s900 = scalar_select %p899, %s45, 1
        %s901 = smul.addr %s900, 4
        %s902 = scalar_lea.vmem %s12, %s901
        %p903 = scmp.lt.s32.totalorder %s45, 1
        %s904 = scalar_select %p903, %s45, 1
        %s905 = scalar_lea.vmem %s14, %s904
        %p907 = scmp.eq.s32.totalorder %s45, 0
        // Predicated region
        $region117: #{vit_forward.1} parent=95 // pred_check
          %p908 = pneg %p907
        $region118: #{vit_forward.1} parent=95 // pred_check_branch
          %910 = sbr.rel (%p908) target = $region120
        $region119: #{vit_forward.1} parent=95 // pred_region
          %v911 = vld [vmem:[%s874] sm:$0xff]
          %v912 = vld [vmem:[#allocation3] sm:$0xf]
          %v913 = vld [vmem:[#allocation3 + $0x4] sm:$0xf]
          %v914 = vld [vmem:[#allocation3 + $0x8] sm:$0xf]
          %v915 = vld [vmem:[#allocation3 + $0xc] sm:$0xf]
          %v916 = vld [vmem:[#allocation3 + $0x10] sm:$0xf]
          %v917 = vld [vmem:[#allocation3 + $0x14] sm:$0xf]
          %v918 = vld [vmem:[#allocation3 + $0x18] sm:$0xf]
          %v919 = vld [vmem:[#allocation3 + $0x1c] sm:$0xf]
          %v920 = vld [vmem:[#allocation3 + $0x20] sm:$0xf]
          %v921 = vld [vmem:[#allocation3 + $0x24] sm:$0xf]
          %v922 = vld [vmem:[#allocation3 + $0x28] sm:$0xf]
          %v923 = vld [vmem:[#allocation3 + $0x2c] sm:$0xf]
          %v924 = vld [vmem:[#allocation3 + $0x30] sm:$0xf]
          %v925 = vld [vmem:[#allocation3 + $0x34] sm:$0xf]
          %v926 = vld [vmem:[#allocation3 + $0x38] sm:$0xf]
          %v927 = vld [vmem:[#allocation3 + $0x3c] sm:$0xf]
          %v928 = vld [vmem:[#allocation3 + $0x40] sm:$0xf]
          %v929 = vld [vmem:[#allocation3 + $0x44] sm:$0xf]
          %v930 = vld [vmem:[#allocation3 + $0x48] sm:$0xf]
          %v931 = vld [vmem:[#allocation3 + $0x4c] sm:$0xf]
          %v932 = vld [vmem:[#allocation3 + $0x50] sm:$0xf]
          %v933 = vld [vmem:[#allocation3 + $0x54] sm:$0xf]
          %v934 = vld [vmem:[#allocation3 + $0x58] sm:$0xf]
          %v935 = vld [vmem:[#allocation3 + $0x5c] sm:$0xf]
          %v936 = vld [vmem:[#allocation3 + $0x60] sm:$0xf]
          %v937 = vld [vmem:[#allocation3 + $0x64] sm:$0xf]
          %v938 = vld [vmem:[#allocation3 + $0x68] sm:$0xf]
          %v939 = vld [vmem:[#allocation3 + $0x6c] sm:$0xf]
          %v940 = vld [vmem:[#allocation3 + $0x70] sm:$0xf]
          %v941 = vld [vmem:[#allocation3 + $0x74] sm:$0xf]
          %v942 = vld [vmem:[#allocation3 + $0x78] sm:$0xf]
          %v943 = vld [vmem:[#allocation3 + $0x7c] sm:$0xf]
          %v945 = vunpack.c.l.b16 %v911
          %v946 = vunpack.c.h.b16 %v911
          %v947 = vpack.c.b16 %v945, %v945
          %v948 = vpack.c.b16 %v946, %v946
          %v983 = vunpack.c.l.b16 %v912
          %v984 = vunpack.c.l.b16 %v913
          %v985 = vunpack.c.l.b16 %v914
          %v986 = vunpack.c.l.b16 %v915
          %v987 = vunpack.c.l.b16 %v916
          %v988 = vunpack.c.l.b16 %v917
          %v989 = vunpack.c.l.b16 %v918
          %v990 = vunpack.c.l.b16 %v919
          %v991 = vunpack.c.l.b16 %v920
          %v992 = vunpack.c.l.b16 %v921
          %v993 = vunpack.c.l.b16 %v922
          %v994 = vunpack.c.l.b16 %v923
          %v995 = vunpack.c.l.b16 %v924
          %v996 = vunpack.c.l.b16 %v925
          %v997 = vunpack.c.l.b16 %v926
          %v998 = vunpack.c.l.b16 %v927
          %v999 = vunpack.c.l.b16 %v928
          %v1000 = vunpack.c.l.b16 %v929
          %v1001 = vunpack.c.l.b16 %v930
          %v1002 = vunpack.c.l.b16 %v931
          %v1003 = vunpack.c.l.b16 %v932
          %v1004 = vunpack.c.l.b16 %v933
          %v1005 = vunpack.c.l.b16 %v934
          %v1006 = vunpack.c.l.b16 %v935
          %v1007 = vunpack.c.l.b16 %v936
          %v1008 = vunpack.c.l.b16 %v937
          %v1009 = vunpack.c.l.b16 %v938
          %v1010 = vunpack.c.l.b16 %v939
          %v1011 = vunpack.c.l.b16 %v940
          %v1012 = vunpack.c.l.b16 %v941
          %v1013 = vunpack.c.l.b16 %v942
          %v1014 = vunpack.c.l.b16 %v943
          %v1015 = vpack.c.b16 %v984, %v983
          %v1016 = vpack.c.b16 %v986, %v985
          %v1017 = vpack.c.b16 %v988, %v987
          %v1018 = vpack.c.b16 %v990, %v989
          %v1019 = vpack.c.b16 %v992, %v991
          %v1020 = vpack.c.b16 %v994, %v993
          %v1021 = vpack.c.b16 %v996, %v995
          %v1022 = vpack.c.b16 %v998, %v997
          %v1023 = vpack.c.b16 %v1000, %v999
          %v1024 = vpack.c.b16 %v1002, %v1001
          %v1025 = vpack.c.b16 %v1004, %v1003
          %v1026 = vpack.c.b16 %v1006, %v1005
          %v1027 = vpack.c.b16 %v1008, %v1007
          %v1028 = vpack.c.b16 %v1010, %v1009
          %v1029 = vpack.c.b16 %v1012, %v1011
          %v1030 = vpack.c.b16 %v1014, %v1013
          %1047 = vmatpush.bf16.msra.mxu0 %v1022
          %1048 = vmatpush.bf16.msra.mxu0 %v1021
          %1049 = vmatpush.bf16.msra.mxu0 %v1020
          %1050 = vmatpush.bf16.msra.mxu0 %v1019
          %1051 = vmatpush.bf16.msra.mxu0 %v1018
          %1052 = vmatpush.bf16.msra.mxu0 %v1017
          %1053 = vmatpush.bf16.msra.mxu0 %v1016
          %1054 = vmatpush.bf16.msra.mxu0 %v1015
          %1055 = vmatmul.bf16.gmra.mxu0 %v947
          %v1056 = vpop.f32.mrf.mxu0
          %v1057 = vadd.f32 0.0, %v1056
          %v1058 = vpop.f32.mrf.mxu0
          %1059 = vdwg.mxu0
          %1060 = vmatpush.bf16.msra.mxu0 %v1030
          %1061 = vmatpush.bf16.msra.mxu0 %v1029
          %1062 = vmatpush.bf16.msra.mxu0 %v1028
          %1063 = vmatpush.bf16.msra.mxu0 %v1027
          %1064 = vmatpush.bf16.msra.mxu0 %v1026
          %1065 = vmatpush.bf16.msra.mxu0 %v1025
          %1066 = vmatpush.bf16.msra.mxu0 %v1024
          %1067 = vmatpush.bf16.msra.mxu0 %v1023
          %1068 = vmatmul.bf16.gmra.mxu0 %v948
          %v1069 = vpop.f32.mrf.mxu0
          %v1070 = vadd.f32 %v1057, %v1069
          %v1071 = vpop.f32.mrf.mxu0
          %1072 = vdwg.mxu0
          %v1073 = vld [vmem:[%s1] sm:$0xff]
          %v1074 = vadd.f32 %v1070, %v1073
          %1075 = vst [vmem:[#allocation2] sm:$0xff] %v1074
        $region120: #{vit_forward.1} parent=95 // pred_fallthru
          _
        %v1076 = vld [vmem:[#allocation2] sm:$0xff]
        %v1077 = vld [vmem:[%s877] sm:$0x1]
        %v1078 = vld [vmem:[%s880] sm:$0x1]
        %1079 = vadd.xlane.f32.xlu0 %v1076
        %v1080 = vpop.xlane.xlu0 %1079
        %v1081 = vrcp.pop 128.0
        %v1082 = vmul.f32 128.0, %v1081
        %v1083 = vsub.f32 1.0, %v1082
        %v1084 = vmul.f32 %v1081, %v1083
        %v1085 = vadd.f32 %v1081, %v1084
        %vm1086 = vweird.f32 %v1081
        %v1087 = vsel %vm1086, %v1081, %v1085
        %v1088 = vmul.f32 %v1080, %v1087
        %v1089 = vsub.f32 %v1076, %v1088
        %v1090 = vmul.f32 %v1089, %v1089
        %1091 = vadd.xlane.f32.xlu0 %v1090
        %v1092 = vpop.xlane.xlu0 %1091
        %v1093 = vmul.f32 %v1092, %v1087
        %v1094 = vadd.f32 %v1093, 1e-06
        %v1095 = vrsqrt.pop %v1094
        %v1096 = vmul.f32 %v1095, %v1094
        %v1097 = vmul.f32 %v1096, %v1095
        %v1098 = vmul.f32 0.5, %v1097
        %v1099 = vsub.f32 1.5, %v1098
        %v1100 = vmul.f32 %v1095, %v1099
        %vm1101 = vweird.f32 %v1094
        %vm1102 = vweird.f32 %v1095
        %vm1103 = vmor %vm1101, %vm1102
        %v1104 = vsel %vm1103, %v1095, %v1100
        %v1105 = vmul.f32 %v1089, %v1104
        %v1107 = vperm.slane %v1077, 0
        %v1109 = vmul.f32 %v1105, %v1107
        %v1111 = vperm.slane %v1078, 0
        %v1113 = vadd.f32 %v1109, %v1111
        %v1114 = vpack.c.bf16 %v1113, %v1113
        %v1115 = vld [vmem:[%s885] sm:$0xff]
        %v1116 = vld [vmem:[%s885 + $0x8] sm:$0xf]
        %v1117 = vld [vmem:[%s885 + $0xc] sm:$0xff]
        %v1118 = vld [vmem:[%s885 + $0x14] sm:$0xf]
        %v1119 = vld [vmem:[%s885 + $0x18] sm:$0xff]
        %v1120 = vld [vmem:[%s885 + $0x20] sm:$0xf]
        %v1121 = vld [vmem:[%s885 + $0x24] sm:$0xff]
        %v1122 = vld [vmem:[%s885 + $0x2c] sm:$0xf]
        %v1123 = vld [vmem:[%s885 + $0x30] sm:$0xff]
        %v1124 = vld [vmem:[%s885 + $0x38] sm:$0xf]
        %v1125 = vld [vmem:[%s885 + $0x3c] sm:$0xff]
        %v1126 = vld [vmem:[%s885 + $0x44] sm:$0xf]
        %v1127 = vld [vmem:[%s885 + $0x48] sm:$0xff]
        %v1128 = vld [vmem:[%s885 + $0x50] sm:$0xf]
        %v1129 = vld [vmem:[%s885 + $0x54] sm:$0xff]
        %v1130 = vld [vmem:[%s885 + $0x5c] sm:$0xf]
        %v1131 = vld [vmem:[%s885 + $0x60] sm:$0xff]
        %v1132 = vld [vmem:[%s885 + $0x68] sm:$0xf]
        %v1133 = vld [vmem:[%s885 + $0x6c] sm:$0xff]
        %v1134 = vld [vmem:[%s885 + $0x74] sm:$0xf]
        %v1135 = vld [vmem:[%s885 + $0x78] sm:$0xff]
        %v1136 = vld [vmem:[%s885 + $0x80] sm:$0xf]
        %v1137 = vld [vmem:[%s885 + $0x84] sm:$0xff]
        %v1138 = vld [vmem:[%s885 + $0x8c] sm:$0xf]
        %v1139 = vld [vmem:[%s885 + $0x90] sm:$0xff]
        %v1140 = vld [vmem:[%s885 + $0x98] sm:$0xf]
        %v1141 = vld [vmem:[%s885 + $0x9c] sm:$0xff]
        %v1142 = vld [vmem:[%s885 + $0xa4] sm:$0xf]
        %v1143 = vld [vmem:[%s885 + $0xa8] sm:$0xff]
        %v1144 = vld [vmem:[%s885 + $0xb0] sm:$0xf]
        %v1145 = vld [vmem:[%s885 + $0xb4] sm:$0xff]
        %v1146 = vld [vmem:[%s885 + $0xbc] sm:$0xf]
        %v1147 = vld [vmem:[%s889] sm:$0x7]
        %v1149 = vperm.slane %v1147, 0
        %v1150 = vperm.slane %v1147, 1
        %v1151 = vperm.slane %v1147, 2
        %v1187 = vunpack.c.l.b16 %v1115
        %v1188 = vunpack.c.h.b16 %v1115
        %v1189 = vunpack.c.l.b16 %v1116
        %v1190 = vunpack.c.l.b16 %v1117
        %v1191 = vunpack.c.h.b16 %v1117
        %v1192 = vunpack.c.l.b16 %v1118
        %v1193 = vunpack.c.l.b16 %v1119
        %v1194 = vunpack.c.h.b16 %v1119
        %v1195 = vunpack.c.l.b16 %v1120
        %v1196 = vunpack.c.l.b16 %v1121
        %v1197 = vunpack.c.h.b16 %v1121
        %v1198 = vunpack.c.l.b16 %v1122
        %v1199 = vunpack.c.l.b16 %v1123
        %v1200 = vunpack.c.h.b16 %v1123
        %v1201 = vunpack.c.l.b16 %v1124
        %v1202 = vunpack.c.l.b16 %v1125
        %v1203 = vunpack.c.h.b16 %v1125
        %v1204 = vunpack.c.l.b16 %v1126
        %v1205 = vunpack.c.l.b16 %v1127
        %v1206 = vunpack.c.h.b16 %v1127
        %v1207 = vunpack.c.l.b16 %v1128
        %v1208 = vunpack.c.l.b16 %v1129
        %v1209 = vunpack.c.h.b16 %v1129
        %v1210 = vunpack.c.l.b16 %v1130
        %v1211 = vunpack.c.l.b16 %v1131
        %v1212 = vunpack.c.h.b16 %v1131
        %v1213 = vunpack.c.l.b16 %v1132
        %v1214 = vunpack.c.l.b16 %v1133
        %v1215 = vunpack.c.h.b16 %v1133
        %v1216 = vunpack.c.l.b16 %v1134
        %v1217 = vunpack.c.l.b16 %v1135
        %v1218 = vunpack.c.h.b16 %v1135
        %v1219 = vunpack.c.l.b16 %v1136
        %v1220 = vunpack.c.l.b16 %v1137
        %v1221 = vunpack.c.h.b16 %v1137
        %v1222 = vunpack.c.l.b16 %v1138
        %v1223 = vunpack.c.l.b16 %v1139
        %v1224 = vunpack.c.h.b16 %v1139
        %v1225 = vunpack.c.l.b16 %v1140
        %v1226 = vunpack.c.l.b16 %v1141
        %v1227 = vunpack.c.h.b16 %v1141
        %v1228 = vunpack.c.l.b16 %v1142
        %v1229 = vunpack.c.l.b16 %v1143
        %v1230 = vunpack.c.h.b16 %v1143
        %v1231 = vunpack.c.l.b16 %v1144
        %v1232 = vunpack.c.l.b16 %v1145
        %v1233 = vunpack.c.h.b16 %v1145
        %v1234 = vunpack.c.l.b16 %v1146
        %v1235 = vpack.c.b16 %v1190, %v1187
        %v1236 = vpack.c.b16 %v1191, %v1188
        %v1237 = vpack.c.b16 %v1192, %v1189
        %v1238 = vpack.c.b16 %v1196, %v1193
        %v1239 = vpack.c.b16 %v1197, %v1194
        %v1240 = vpack.c.b16 %v1198, %v1195
        %v1241 = vpack.c.b16 %v1202, %v1199
        %v1242 = vpack.c.b16 %v1203, %v1200
        %v1243 = vpack.c.b16 %v1204, %v1201
        %v1244 = vpack.c.b16 %v1208, %v1205
        %v1245 = vpack.c.b16 %v1209, %v1206
        %v1246 = vpack.c.b16 %v1210, %v1207
        %v1247 = vpack.c.b16 %v1214, %v1211
        %v1248 = vpack.c.b16 %v1215, %v1212
        %v1249 = vpack.c.b16 %v1216, %v1213
        %v1250 = vpack.c.b16 %v1220, %v1217
        %v1251 = vpack.c.b16 %v1221, %v1218
        %v1252 = vpack.c.b16 %v1222, %v1219
        %v1253 = vpack.c.b16 %v1226, %v1223
        %v1254 = vpack.c.b16 %v1227, %v1224
        %v1255 = vpack.c.b16 %v1228, %v1225
        %v1256 = vpack.c.b16 %v1232, %v1229
        %v1257 = vpack.c.b16 %v1233, %v1230
        %v1258 = vpack.c.b16 %v1234, %v1231
        %1283 = vmatpush.bf16.msra.mxu0 %v1256
        %1284 = vmatpush.bf16.msra.mxu0 %v1253
        %1285 = vmatpush.bf16.msra.mxu0 %v1250
        %1286 = vmatpush.bf16.msra.mxu0 %v1247
        %1287 = vmatpush.bf16.msra.mxu0 %v1244
        %1288 = vmatpush.bf16.msra.mxu0 %v1241
        %1289 = vmatpush.bf16.msra.mxu0 %v1238
        %1290 = vmatpush.bf16.msra.mxu0 %v1235
        %1291 = vmatmul.bf16.gmra.mxu0 %v1114
        %v1292 = vpop.f32.mrf.mxu0
        %v1293 = vadd.f32 %v1149, %v1292
        %v1294 = vpop.f32.mrf.mxu0
        %1295 = vdwg.mxu0
        %1296 = vmatpush.bf16.msra.mxu0 %v1257
        %1297 = vmatpush.bf16.msra.mxu0 %v1254
        %1298 = vmatpush.bf16.msra.mxu0 %v1251
        %1299 = vmatpush.bf16.msra.mxu0 %v1248
        %1300 = vmatpush.bf16.msra.mxu0 %v1245
        %1301 = vmatpush.bf16.msra.mxu0 %v1242
        %1302 = vmatpush.bf16.msra.mxu0 %v1239
        %1303 = vmatpush.bf16.msra.mxu0 %v1236
        %1304 = vmatmul.bf16.gmra.mxu0 %v1114
        %v1305 = vpop.f32.mrf.mxu0
        %v1306 = vadd.f32 %v1150, %v1305
        %v1307 = vpop.f32.mrf.mxu0
        %1308 = vdwg.mxu0
        %1309 = vmatpush.bf16.msra.mxu0 %v1258
        %1310 = vmatpush.bf16.msra.mxu0 %v1255
        %1311 = vmatpush.bf16.msra.mxu0 %v1252
        %1312 = vmatpush.bf16.msra.mxu0 %v1249
        %1313 = vmatpush.bf16.msra.mxu0 %v1246
        %1314 = vmatpush.bf16.msra.mxu0 %v1243
        %1315 = vmatpush.bf16.msra.mxu0 %v1240
        %1316 = vmatpush.bf16.msra.mxu0 %v1237
        %1317 = vmatmul.bf16.gmra.mxu0 %v1114
        %v1318 = vpop.f32.mrf.mxu0
        %v1319 = vadd.f32 %v1151, %v1318
        %v1320 = vpop.f32.mrf.mxu0
        %1321 = vdwg.mxu0
        %v1322 = vlaneseq
        %v1323 = vand.u32 %v1322, 127
        %vm1324 = vcmp.lt.s32.totalorder %v1323, 5
        %v1325 = vsel %vm1324, 0.0, -1e+30
        %1327 = vrot.lane.b32.xlu0 %v1293, 96
        %v1328 = vpop.permute.xlu0 %1327
        %1330 = vrot.lane.b32.xlu0 %v1293, 64
        %v1331 = vpop.permute.xlu0 %1330
        %1333 = vrot.lane.b32.xlu0 %v1293, 32
        %v1334 = vpop.permute.xlu0 %1333
        %1337 = vrot.lane.b32.xlu0 %v1306, 96
        %v1338 = vpop.permute.xlu0 %1337
        %1340 = vrot.lane.b32.xlu0 %v1306, 64
        %v1341 = vpop.permute.xlu0 %1340
        %1343 = vrot.lane.b32.xlu0 %v1306, 32
        %v1344 = vpop.permute.xlu0 %1343
        %1347 = vrot.lane.b32.xlu0 %v1319, 96
        %v1348 = vpop.permute.xlu0 %1347
        %1350 = vrot.lane.b32.xlu0 %v1319, 64
        %v1351 = vpop.permute.xlu0 %1350
        %1353 = vrot.lane.b32.xlu0 %v1319, 32
        %v1354 = vpop.permute.xlu0 %1353
        %v1356 = vpack.c.bf16 %v1293, %v1293
        %v1357 = vpack.c.bf16 %v1328, %v1328
        %v1358 = vpack.c.bf16 %v1331, %v1331
        %v1359 = vpack.c.bf16 %v1334, %v1334
        %v1360 = vpack.c.bf16 %v1306, %v1306
        %v1361 = vpack.c.bf16 %v1338, %v1338
        %v1362 = vpack.c.bf16 %v1341, %v1341
        %v1363 = vpack.c.bf16 %v1344, %v1344
        %vm1364 = vcmask 261120
        %v1366 = vsel %vm1364, %v1356, 0
        %v1369 = vsel %vm1364, %v1360, 0
        %1371 = vmatpush.bf16.xpose.msra.mxu0 0
        %1372 = vmatpush.bf16.xpose.msra.mxu0 0
        %1373 = vmatpush.bf16.xpose.msra.mxu0 0
        %1374 = vmatpush.bf16.xpose.msra.mxu0 0
        %1375 = vmatpush.bf16.xpose.msra.mxu0 0
        %1376 = vmatpush.bf16.xpose.msra.mxu0 0
        %1377 = vmatpush.bf16.xpose.msra.mxu0 0
        %1378 = vmatpush.bf16.xpose.msra.mxu0 %v1369
        %1379 = vmatmul.bf16.gmra.mxu0 %v1366
        %v1380 = vpop.f32.mrf.mxu0
        %v1381 = vadd.f32 0.0, %v1380
        %v1382 = vpop.f32.mrf.mxu0
        %1383 = vdwg.mxu0
        %v1385 = vsel %vm1364, %v1357, 0
        %v1388 = vsel %vm1364, %v1361, 0
        %1390 = vmatpush.bf16.xpose.msra.mxu0 0
        %1391 = vmatpush.bf16.xpose.msra.mxu0 0
        %1392 = vmatpush.bf16.xpose.msra.mxu0 0
        %1393 = vmatpush.bf16.xpose.msra.mxu0 0
        %1394 = vmatpush.bf16.xpose.msra.mxu0 0
        %1395 = vmatpush.bf16.xpose.msra.mxu0 0
        %1396 = vmatpush.bf16.xpose.msra.mxu0 0
        %1397 = vmatpush.bf16.xpose.msra.mxu0 %v1388
        %1398 = vmatmul.bf16.gmra.mxu0 %v1385
        %v1399 = vpop.f32.mrf.mxu0
        %v1400 = vadd.f32 0.0, %v1399
        %v1401 = vpop.f32.mrf.mxu0
        %1402 = vdwg.mxu0
        %v1404 = vsel %vm1364, %v1358, 0
        %v1407 = vsel %vm1364, %v1362, 0
        %1409 = vmatpush.bf16.xpose.msra.mxu0 0
        %1410 = vmatpush.bf16.xpose.msra.mxu0 0
        %1411 = vmatpush.bf16.xpose.msra.mxu0 0
        %1412 = vmatpush.bf16.xpose.msra.mxu0 0
        %1413 = vmatpush.bf16.xpose.msra.mxu0 0
        %1414 = vmatpush.bf16.xpose.msra.mxu0 0
        %1415 = vmatpush.bf16.xpose.msra.mxu0 0
        %1416 = vmatpush.bf16.xpose.msra.mxu0 %v1407
        %1417 = vmatmul.bf16.gmra.mxu0 %v1404
        %v1418 = vpop.f32.mrf.mxu0
        %v1419 = vadd.f32 0.0, %v1418
        %v1420 = vpop.f32.mrf.mxu0
        %1421 = vdwg.mxu0
        %v1423 = vsel %vm1364, %v1359, 0
        %v1426 = vsel %vm1364, %v1363, 0
        %1428 = vmatpush.bf16.xpose.msra.mxu0 0
        %1429 = vmatpush.bf16.xpose.msra.mxu0 0
        %1430 = vmatpush.bf16.xpose.msra.mxu0 0
        %1431 = vmatpush.bf16.xpose.msra.mxu0 0
        %1432 = vmatpush.bf16.xpose.msra.mxu0 0
        %1433 = vmatpush.bf16.xpose.msra.mxu0 0
        %1434 = vmatpush.bf16.xpose.msra.mxu0 0
        %1435 = vmatpush.bf16.xpose.msra.mxu0 %v1426
        %1436 = vmatmul.bf16.gmra.mxu0 %v1423
        %v1437 = vpop.f32.mrf.mxu0
        %v1438 = vadd.f32 0.0, %v1437
        %v1439 = vpop.f32.mrf.mxu0
        %1440 = vdwg.mxu0
        %v1441 = vmul.f32 %v1381, 0.17677669
        %v1442 = vmul.f32 %v1400, 0.17677669
        %v1443 = vmul.f32 %v1419, 0.17677669
        %v1444 = vmul.f32 %v1438, 0.17677669
        %v1445 = vadd.f32 %v1441, %v1325
        %v1446 = vadd.f32 %v1442, %v1325
        %v1447 = vadd.f32 %v1443, %v1325
        %v1448 = vadd.f32 %v1444, %v1325
        %vm1449 = vcmask 64512
        %v1450 = vsel %vm1449, %v1445, -inf
        %1451 = vmax.xlane.f32.xlu0 %v1450
        %v1452 = vpop.xlane.xlu0 %1451
        %v1453 = vsel %vm1449, %v1446, -inf
        %1454 = vmax.xlane.f32.xlu0 %v1453
        %v1455 = vpop.xlane.xlu0 %1454
        %v1456 = vsel %vm1449, %v1447, -inf
        %1457 = vmax.xlane.f32.xlu0 %v1456
        %v1458 = vpop.xlane.xlu0 %1457
        %v1459 = vsel %vm1449, %v1448, -inf
        %1460 = vmax.xlane.f32.xlu0 %v1459
        %v1461 = vpop.xlane.xlu0 %1460
        %v1462 = vsub.f32 %v1445, %v1452
        %v1463 = vsub.f32 %v1446, %v1455
        %v1464 = vsub.f32 %v1447, %v1458
        %v1465 = vsub.f32 %v1448, %v1461
        %v1466 = vmul.f32 %v1462, 1.442695
        %v1467 = vpow.pop %v1466
        %v1468 = vmul.f32 %v1463, 1.442695
        %v1469 = vpow.pop %v1468
        %v1470 = vmul.f32 %v1464, 1.442695
        %v1471 = vpow.pop %v1470
        %v1472 = vmul.f32 %v1465, 1.442695
        %v1473 = vpow.pop %v1472
        %v1474 = vsel %vm1449, %v1467, 0.0
        %1475 = vadd.xlane.f32.xlu0 %v1474
        %v1476 = vpop.xlane.xlu0 %1475
        %v1477 = vsel %vm1449, %v1469, 0.0
        %1478 = vadd.xlane.f32.xlu0 %v1477
        %v1479 = vpop.xlane.xlu0 %1478
        %v1480 = vsel %vm1449, %v1471, 0.0
        %1481 = vadd.xlane.f32.xlu0 %v1480
        %v1482 = vpop.xlane.xlu0 %1481
        %v1483 = vsel %vm1449, %v1473, 0.0
        %1484 = vadd.xlane.f32.xlu0 %v1483
        %v1485 = vpop.xlane.xlu0 %1484
        %v1486 = vpack.c.bf16 %v1467, %v1467
        %v1487 = vpack.c.bf16 %v1469, %v1469
        %v1488 = vpack.c.bf16 %v1471, %v1471
        %v1489 = vpack.c.bf16 %v1473, %v1473
        %v1490 = vpack.c.bf16 %v1319, %v1319
        %v1491 = vpack.c.bf16 %v1348, %v1348
        %v1492 = vpack.c.bf16 %v1351, %v1351
        %v1493 = vpack.c.bf16 %v1354, %v1354
        %v1495 = vsel %vm1449, %v1486, 0
        %vm1497 = vcmask 1043456
        %v1499 = vsel %vm1497, %v1490, 0
        %1501 = vmatpush.bf16.msra.mxu0 0
        %1502 = vmatpush.bf16.msra.mxu0 0
        %1503 = vmatpush.bf16.msra.mxu0 0
        %1504 = vmatpush.bf16.msra.mxu0 0
        %1505 = vmatpush.bf16.msra.mxu0 0
        %1506 = vmatpush.bf16.msra.mxu0 0
        %1507 = vmatpush.bf16.msra.mxu0 0
        %1508 = vmatpush.bf16.msra.mxu0 %v1499
        %1509 = vmatmul.bf16.gmra.mxu0 %v1495
        %v1510 = vpop.f32.mrf.mxu0
        %v1511 = vadd.f32 0.0, %v1510
        %v1512 = vpop.f32.mrf.mxu0
        %1513 = vdwg.mxu0
        %v1515 = vsel %vm1449, %v1487, 0
        %v1518 = vsel %vm1497, %v1491, 0
        %1520 = vmatpush.bf16.msra.mxu0 0
        %1521 = vmatpush.bf16.msra.mxu0 0
        %1522 = vmatpush.bf16.msra.mxu0 0
        %1523 = vmatpush.bf16.msra.mxu0 0
        %1524 = vmatpush.bf16.msra.mxu0 0
        %1525 = vmatpush.bf16.msra.mxu0 0
        %1526 = vmatpush.bf16.msra.mxu0 0
        %1527 = vmatpush.bf16.msra.mxu0 %v1518
        %1528 = vmatmul.bf16.gmra.mxu0 %v1515
        %v1529 = vpop.f32.mrf.mxu0
        %v1530 = vadd.f32 0.0, %v1529
        %v1531 = vpop.f32.mrf.mxu0
        %1532 = vdwg.mxu0
        %v1534 = vsel %vm1449, %v1488, 0
        %v1537 = vsel %vm1497, %v1492, 0
        %1539 = vmatpush.bf16.msra.mxu0 0
        %1540 = vmatpush.bf16.msra.mxu0 0
        %1541 = vmatpush.bf16.msra.mxu0 0
        %1542 = vmatpush.bf16.msra.mxu0 0
        %1543 = vmatpush.bf16.msra.mxu0 0
        %1544 = vmatpush.bf16.msra.mxu0 0
        %1545 = vmatpush.bf16.msra.mxu0 0
        %1546 = vmatpush.bf16.msra.mxu0 %v1537
        %1547 = vmatmul.bf16.gmra.mxu0 %v1534
        %v1548 = vpop.f32.mrf.mxu0
        %v1549 = vadd.f32 0.0, %v1548
        %v1550 = vpop.f32.mrf.mxu0
        %1551 = vdwg.mxu0
        %v1553 = vsel %vm1449, %v1489, 0
        %v1556 = vsel %vm1497, %v1493, 0
        %1558 = vmatpush.bf16.msra.mxu0 0
        %1559 = vmatpush.bf16.msra.mxu0 0
        %1560 = vmatpush.bf16.msra.mxu0 0
        %1561 = vmatpush.bf16.msra.mxu0 0
        %1562 = vmatpush.bf16.msra.mxu0 0
        %1563 = vmatpush.bf16.msra.mxu0 0
        %1564 = vmatpush.bf16.msra.mxu0 0
        %1565 = vmatpush.bf16.msra.mxu0 %v1556
        %1566 = vmatmul.bf16.gmra.mxu0 %v1553
        %v1567 = vpop.f32.mrf.mxu0
        %v1568 = vadd.f32 0.0, %v1567
        %v1569 = vpop.f32.mrf.mxu0
        %1570 = vdwg.mxu0
        %v1571 = vrcp.pop %v1476
        %v1572 = vrcp.pop %v1479
        %v1573 = vrcp.pop %v1482
        %v1574 = vrcp.pop %v1485
        %v1575 = vmul.f32 %v1511, %v1571
        %v1576 = vmul.f32 %v1530, %v1572
        %v1577 = vmul.f32 %v1549, %v1573
        %v1578 = vmul.f32 %v1568, %v1574
        %1580 = vrot.lane.b32.xlu0 %v1576, 32
        %v1581 = vpop.permute.xlu0 %1580
        %1584 = vrot.lane.b32.xlu0 %v1577, 64
        %v1585 = vpop.permute.xlu0 %1584
        %1588 = vrot.lane.b32.xlu0 %v1578, 96
        %v1589 = vpop.permute.xlu0 %1588
        %v1591 = vsel %vm1364, %v1575, %v1581
        %vm1592 = vcmask 523264
        %v1593 = vsel %vm1592, %v1591, %v1585
        %vm1594 = vcmask 785408
        %v1595 = vsel %vm1594, %v1593, %v1589
        %v1596 = vpack.c.bf16 %v1595, %v1595
        %v1597 = vld [vmem:[%s744] sm:$0xf]
        %v1598 = vld [vmem:[%s744 + $0x4] sm:$0xf]
        %v1599 = vld [vmem:[%s744 + $0x8] sm:$0xf]
        %v1600 = vld [vmem:[%s744 + $0xc] sm:$0xf]
        %v1601 = vld [vmem:[%s744 + $0x10] sm:$0xf]
        %v1602 = vld [vmem:[%s744 + $0x14] sm:$0xf]
        %v1603 = vld [vmem:[%s744 + $0x18] sm:$0xf]
        %v1604 = vld [vmem:[%s744 + $0x1c] sm:$0xf]
        %v1605 = vld [vmem:[%s744 + $0x20] sm:$0xf]
        %v1606 = vld [vmem:[%s744 + $0x24] sm:$0xf]
        %v1607 = vld [vmem:[%s744 + $0x28] sm:$0xf]
        %v1608 = vld [vmem:[%s744 + $0x2c] sm:$0xf]
        %v1609 = vld [vmem:[%s744 + $0x30] sm:$0xf]
        %v1610 = vld [vmem:[%s744 + $0x34] sm:$0xf]
        %v1611 = vld [vmem:[%s744 + $0x38] sm:$0xf]
        %v1612 = vld [vmem:[%s744 + $0x3c] sm:$0xf]
        %v1613 = vld [vmem:[%s892] sm:$0x1]
        %v1615 = vperm.slane %v1613, 0
        %v1633 = vunpack.c.l.b16 %v1597
        %v1634 = vunpack.c.l.b16 %v1598
        %v1635 = vunpack.c.l.b16 %v1599
        %v1636 = vunpack.c.l.b16 %v1600
        %v1637 = vunpack.c.l.b16 %v1601
        %v1638 = vunpack.c.l.b16 %v1602
        %v1639 = vunpack.c.l.b16 %v1603
        %v1640 = vunpack.c.l.b16 %v1604
        %v1641 = vunpack.c.l.b16 %v1605
        %v1642 = vunpack.c.l.b16 %v1606
        %v1643 = vunpack.c.l.b16 %v1607
        %v1644 = vunpack.c.l.b16 %v1608
        %v1645 = vunpack.c.l.b16 %v1609
        %v1646 = vunpack.c.l.b16 %v1610
        %v1647 = vunpack.c.l.b16 %v1611
        %v1648 = vunpack.c.l.b16 %v1612
        %v1649 = vpack.c.b16 %v1634, %v1633
        %v1650 = vpack.c.b16 %v1636, %v1635
        %v1651 = vpack.c.b16 %v1638, %v1637
        %v1652 = vpack.c.b16 %v1640, %v1639
        %v1653 = vpack.c.b16 %v1642, %v1641
        %v1654 = vpack.c.b16 %v1644, %v1643
        %v1655 = vpack.c.b16 %v1646, %v1645
        %v1656 = vpack.c.b16 %v1648, %v1647
        %1665 = vmatpush.bf16.msra.mxu0 %v1656
        %1666 = vmatpush.bf16.msra.mxu0 %v1655
        %1667 = vmatpush.bf16.msra.mxu0 %v1654
        %1668 = vmatpush.bf16.msra.mxu0 %v1653
        %1669 = vmatpush.bf16.msra.mxu0 %v1652
        %1670 = vmatpush.bf16.msra.mxu0 %v1651
        %1671 = vmatpush.bf16.msra.mxu0 %v1650
        %1672 = vmatpush.bf16.msra.mxu0 %v1649
        %1673 = vmatmul.bf16.gmra.mxu0 %v1596
        %v1674 = vpop.f32.mrf.mxu0
        %v1675 = vadd.f32 %v1615, %v1674
        %v1676 = vpop.f32.mrf.mxu0
        %1677 = vdwg.mxu0
        %v1678 = vadd.f32 %v1076, %v1675
        %v1679 = vld [vmem:[%s895] sm:$0x1]
        %v1680 = vld [vmem:[%s898] sm:$0x1]
        %1681 = vadd.xlane.f32.xlu0 %v1678
        %v1682 = vpop.xlane.xlu0 %1681
        %v1683 = vmul.f32 %v1682, %v1087
        %v1684 = vsub.f32 %v1678, %v1683
        %v1685 = vmul.f32 %v1684, %v1684
        %1686 = vadd.xlane.f32.xlu0 %v1685
        %v1687 = vpop.xlane.xlu0 %1686
        %v1688 = vmul.f32 %v1687, %v1087
        %v1689 = vadd.f32 %v1688, 1e-06
        %v1690 = vrsqrt.pop %v1689
        %v1691 = vmul.f32 %v1690, %v1689
        %v1692 = vmul.f32 %v1691, %v1690
        %v1693 = vmul.f32 0.5, %v1692
        %v1694 = vsub.f32 1.5, %v1693
        %v1695 = vmul.f32 %v1690, %v1694
        %vm1696 = vweird.f32 %v1689
        %vm1697 = vweird.f32 %v1690
        %vm1698 = vmor %vm1696, %vm1697
        %v1699 = vsel %vm1698, %v1690, %v1695
        %v1700 = vmul.f32 %v1684, %v1699
        %v1702 = vperm.slane %v1679, 0
        %v1704 = vmul.f32 %v1700, %v1702
        %v1706 = vperm.slane %v1680, 0
        %v1708 = vadd.f32 %v1704, %v1706
        %v1709 = vpack.c.bf16 %v1708, %v1708
        %v1710 = vld [vmem:[%s754] sm:$0xff]
        %v1711 = vld [vmem:[%s754 + $0x8] sm:$0xff]
        %v1712 = vld [vmem:[%s754 + $0x10] sm:$0xff]
        %v1713 = vld [vmem:[%s754 + $0x18] sm:$0xff]
        %v1714 = vld [vmem:[%s754 + $0x20] sm:$0xff]
        %v1715 = vld [vmem:[%s754 + $0x28] sm:$0xff]
        %v1716 = vld [vmem:[%s754 + $0x30] sm:$0xff]
        %v1717 = vld [vmem:[%s754 + $0x38] sm:$0xff]
        %v1718 = vld [vmem:[%s754 + $0x40] sm:$0xff]
        %v1719 = vld [vmem:[%s754 + $0x48] sm:$0xff]
        %v1720 = vld [vmem:[%s754 + $0x50] sm:$0xff]
        %v1721 = vld [vmem:[%s754 + $0x58] sm:$0xff]
        %v1722 = vld [vmem:[%s754 + $0x60] sm:$0xff]
        %v1723 = vld [vmem:[%s754 + $0x68] sm:$0xff]
        %v1724 = vld [vmem:[%s754 + $0x70] sm:$0xff]
        %v1725 = vld [vmem:[%s754 + $0x78] sm:$0xff]
        %v1726 = vld [vmem:[%s754 + $0x80] sm:$0xff]
        %v1727 = vld [vmem:[%s754 + $0x88] sm:$0xff]
        %v1728 = vld [vmem:[%s754 + $0x90] sm:$0xff]
        %v1729 = vld [vmem:[%s754 + $0x98] sm:$0xff]
        %v1730 = vld [vmem:[%s754 + $0xa0] sm:$0xff]
        %v1731 = vld [vmem:[%s754 + $0xa8] sm:$0xff]
        %v1732 = vld [vmem:[%s754 + $0xb0] sm:$0xff]
        %v1733 = vld [vmem:[%s754 + $0xb8] sm:$0xff]
        %v1734 = vld [vmem:[%s754 + $0xc0] sm:$0xff]
        %v1735 = vld [vmem:[%s754 + $0xc8] sm:$0xff]
        %v1736 = vld [vmem:[%s754 + $0xd0] sm:$0xff]
        %v1737 = vld [vmem:[%s754 + $0xd8] sm:$0xff]
        %v1738 = vld [vmem:[%s754 + $0xe0] sm:$0xff]
        %v1739 = vld [vmem:[%s754 + $0xe8] sm:$0xff]
        %v1740 = vld [vmem:[%s754 + $0xf0] sm:$0xff]
        %v1741 = vld [vmem:[%s754 + $0xf8] sm:$0xff]
        %v1742 = vld [vmem:[%s902] sm:$0xf]
        %v1744 = vperm.slane %v1742, 0
        %v1745 = vperm.slane %v1742, 1
        %v1746 = vperm.slane %v1742, 2
        %v1747 = vperm.slane %v1742, 3
        %v1784 = vunpack.c.l.b16 %v1710
        %v1785 = vunpack.c.h.b16 %v1710
        %v1786 = vunpack.c.l.b16 %v1711
        %v1787 = vunpack.c.h.b16 %v1711
        %v1788 = vunpack.c.l.b16 %v1712
        %v1789 = vunpack.c.h.b16 %v1712
        %v1790 = vunpack.c.l.b16 %v1713
        %v1791 = vunpack.c.h.b16 %v1713
        %v1792 = vunpack.c.l.b16 %v1714
        %v1793 = vunpack.c.h.b16 %v1714
        %v1794 = vunpack.c.l.b16 %v1715
        %v1795 = vunpack.c.h.b16 %v1715
        %v1796 = vunpack.c.l.b16 %v1716
        %v1797 = vunpack.c.h.b16 %v1716
        %v1798 = vunpack.c.l.b16 %v1717
        %v1799 = vunpack.c.h.b16 %v1717
        %v1800 = vunpack.c.l.b16 %v1718
        %v1801 = vunpack.c.h.b16 %v1718
        %v1802 = vunpack.c.l.b16 %v1719
        %v1803 = vunpack.c.h.b16 %v1719
        %v1804 = vunpack.c.l.b16 %v1720
        %v1805 = vunpack.c.h.b16 %v1720
        %v1806 = vunpack.c.l.b16 %v1721
        %v1807 = vunpack.c.h.b16 %v1721
        %v1808 = vunpack.c.l.b16 %v1722
        %v1809 = vunpack.c.h.b16 %v1722
        %v1810 = vunpack.c.l.b16 %v1723
        %v1811 = vunpack.c.h.b16 %v1723
        %v1812 = vunpack.c.l.b16 %v1724
        %v1813 = vunpack.c.h.b16 %v1724
        %v1814 = vunpack.c.l.b16 %v1725
        %v1815 = vunpack.c.h.b16 %v1725
        %v1816 = vunpack.c.l.b16 %v1726
        %v1817 = vunpack.c.h.b16 %v1726
        %v1818 = vunpack.c.l.b16 %v1727
        %v1819 = vunpack.c.h.b16 %v1727
        %v1820 = vunpack.c.l.b16 %v1728
        %v1821 = vunpack.c.h.b16 %v1728
        %v1822 = vunpack.c.l.b16 %v1729
        %v1823 = vunpack.c.h.b16 %v1729
        %v1824 = vunpack.c.l.b16 %v1730
        %v1825 = vunpack.c.h.b16 %v1730
        %v1826 = vunpack.c.l.b16 %v1731
        %v1827 = vunpack.c.h.b16 %v1731
        %v1828 = vunpack.c.l.b16 %v1732
        %v1829 = vunpack.c.h.b16 %v1732
        %v1830 = vunpack.c.l.b16 %v1733
        %v1831 = vunpack.c.h.b16 %v1733
        %v1832 = vunpack.c.l.b16 %v1734
        %v1833 = vunpack.c.h.b16 %v1734
        %v1834 = vunpack.c.l.b16 %v1735
        %v1835 = vunpack.c.h.b16 %v1735
        %v1836 = vunpack.c.l.b16 %v1736
        %v1837 = vunpack.c.h.b16 %v1736
        %v1838 = vunpack.c.l.b16 %v1737
        %v1839 = vunpack.c.h.b16 %v1737
        %v1840 = vunpack.c.l.b16 %v1738
        %v1841 = vunpack.c.h.b16 %v1738
        %v1842 = vunpack.c.l.b16 %v1739
        %v1843 = vunpack.c.h.b16 %v1739
        %v1844 = vunpack.c.l.b16 %v1740
        %v1845 = vunpack.c.h.b16 %v1740
        %v1846 = vunpack.c.l.b16 %v1741
        %v1847 = vunpack.c.h.b16 %v1741
        %v1848 = vpack.c.b16 %v1788, %v1784
        %v1849 = vpack.c.b16 %v1789, %v1785
        %v1850 = vpack.c.b16 %v1790, %v1786
        %v1851 = vpack.c.b16 %v1791, %v1787
        %v1852 = vpack.c.b16 %v1796, %v1792
        %v1853 = vpack.c.b16 %v1797, %v1793
        %v1854 = vpack.c.b16 %v1798, %v1794
        %v1855 = vpack.c.b16 %v1799, %v1795
        %v1856 = vpack.c.b16 %v1804, %v1800
        %v1857 = vpack.c.b16 %v1805, %v1801
        %v1858 = vpack.c.b16 %v1806, %v1802
        %v1859 = vpack.c.b16 %v1807, %v1803
        %v1860 = vpack.c.b16 %v1812, %v1808
        %v1861 = vpack.c.b16 %v1813, %v1809
        %v1862 = vpack.c.b16 %v1814, %v1810
        %v1863 = vpack.c.b16 %v1815, %v1811
        %v1864 = vpack.c.b16 %v1820, %v1816
        %v1865 = vpack.c.b16 %v1821, %v1817
        %v1866 = vpack.c.b16 %v1822, %v1818
        %v1867 = vpack.c.b16 %v1823, %v1819
        %v1868 = vpack.c.b16 %v1828, %v1824
        %v1869 = vpack.c.b16 %v1829, %v1825
        %v1870 = vpack.c.b16 %v1830, %v1826
        %v1871 = vpack.c.b16 %v1831, %v1827
        %v1872 = vpack.c.b16 %v1836, %v1832
        %v1873 = vpack.c.b16 %v1837, %v1833
        %v1874 = vpack.c.b16 %v1838, %v1834
        %v1875 = vpack.c.b16 %v1839, %v1835
        %v1876 = vpack.c.b16 %v1844, %v1840
        %v1877 = vpack.c.b16 %v1845, %v1841
        %v1878 = vpack.c.b16 %v1846, %v1842
        %v1879 = vpack.c.b16 %v1847, %v1843
        %1912 = vmatpush.bf16.msra.mxu0 %v1876
        %1913 = vmatpush.bf16.msra.mxu0 %v1872
        %1914 = vmatpush.bf16.msra.mxu0 %v1868
        %1915 = vmatpush.bf16.msra.mxu0 %v1864
        %1916 = vmatpush.bf16.msra.mxu0 %v1860
        %1917 = vmatpush.bf16.msra.mxu0 %v1856
        %1918 = vmatpush.bf16.msra.mxu0 %v1852
        %1919 = vmatpush.bf16.msra.mxu0 %v1848
        %1920 = vmatmul.bf16.gmra.mxu0 %v1709
        %v1921 = vpop.f32.mrf.mxu0
        %v1922 = vadd.f32 %v1744, %v1921
        %v1923 = vpop.f32.mrf.mxu0
        %1924 = vdwg.mxu0
        %1925 = vmatpush.bf16.msra.mxu0 %v1877
        %1926 = vmatpush.bf16.msra.mxu0 %v1873
        %1927 = vmatpush.bf16.msra.mxu0 %v1869
        %1928 = vmatpush.bf16.msra.mxu0 %v1865
        %1929 = vmatpush.bf16.msra.mxu0 %v1861
        %1930 = vmatpush.bf16.msra.mxu0 %v1857
        %1931 = vmatpush.bf16.msra.mxu0 %v1853
        %1932 = vmatpush.bf16.msra.mxu0 %v1849
        %1933 = vmatmul.bf16.gmra.mxu0 %v1709
        %v1934 = vpop.f32.mrf.mxu0
        %v1935 = vadd.f32 %v1745, %v1934
        %v1936 = vpop.f32.mrf.mxu0
        %1937 = vdwg.mxu0
        %1938 = vmatpush.bf16.msra.mxu0 %v1878
        %1939 = vmatpush.bf16.msra.mxu0 %v1874
        %1940 = vmatpush.bf16.msra.mxu0 %v1870
        %1941 = vmatpush.bf16.msra.mxu0 %v1866
        %1942 = vmatpush.bf16.msra.mxu0 %v1862
        %1943 = vmatpush.bf16.msra.mxu0 %v1858
        %1944 = vmatpush.bf16.msra.mxu0 %v1854
        %1945 = vmatpush.bf16.msra.mxu0 %v1850
        %1946 = vmatmul.bf16.gmra.mxu0 %v1709
        %v1947 = vpop.f32.mrf.mxu0
        %v1948 = vadd.f32 %v1746, %v1947
        %v1949 = vpop.f32.mrf.mxu0
        %1950 = vdwg.mxu0
        %1951 = vmatpush.bf16.msra.mxu0 %v1879
        %1952 = vmatpush.bf16.msra.mxu0 %v1875
        %1953 = vmatpush.bf16.msra.mxu0 %v1871
        %1954 = vmatpush.bf16.msra.mxu0 %v1867
        %1955 = vmatpush.bf16.msra.mxu0 %v1863
        %1956 = vmatpush.bf16.msra.mxu0 %v1859
        %1957 = vmatpush.bf16.msra.mxu0 %v1855
        %1958 = vmatpush.bf16.msra.mxu0 %v1851
        %1959 = vmatmul.bf16.gmra.mxu0 %v1709
        %v1960 = vpop.f32.mrf.mxu0
        %v1961 = vadd.f32 %v1747, %v1960
        %v1962 = vpop.f32.mrf.mxu0
        %1963 = vdwg.mxu0
        %v1964 = vmul.f32 %v1922, %v1922
        %v1965 = vmul.f32 %v1935, %v1935
        %v1966 = vmul.f32 %v1948, %v1948
        %v1967 = vmul.f32 %v1961, %v1961
        %v1968 = vmul.f32 %v1922, %v1964
        %v1969 = vmul.f32 %v1935, %v1965
        %v1970 = vmul.f32 %v1948, %v1966
        %v1971 = vmul.f32 %v1961, %v1967
        %v1972 = vmul.f32 %v1968, 0.044715
        %v1973 = vmul.f32 %v1969, 0.044715
        %v1974 = vmul.f32 %v1970, 0.044715
        %v1975 = vmul.f32 %v1971, 0.044715
        %v1976 = vadd.f32 %v1922, %v1972
        %v1977 = vadd.f32 %v1935, %v1973
        %v1978 = vadd.f32 %v1948, %v1974
        %v1979 = vadd.f32 %v1961, %v1975
        %v1980 = vmul.f32 %v1976, 0.7978846
        %v1981 = vmul.f32 %v1977, 0.7978846
        %v1982 = vmul.f32 %v1978, 0.7978846
        %v1983 = vmul.f32 %v1979, 0.7978846
        %v1984 = vtanh.pop %v1980
        %v1985 = vtanh.pop %v1981
        %v1986 = vtanh.pop %v1982
        %v1987 = vtanh.pop %v1983
        %v1988 = vadd.f32 %v1984, 1.0
        %v1989 = vadd.f32 %v1985, 1.0
        %v1990 = vadd.f32 %v1986, 1.0
        %v1991 = vadd.f32 %v1987, 1.0
        %v1992 = vmul.f32 %v1988, 0.5
        %v1993 = vmul.f32 %v1989, 0.5
        %v1994 = vmul.f32 %v1990, 0.5
        %v1995 = vmul.f32 %v1991, 0.5
        %v1996 = vmul.f32 %v1922, %v1992
        %v1997 = vmul.f32 %v1935, %v1993
        %v1998 = vmul.f32 %v1948, %v1994
        %v1999 = vmul.f32 %v1961, %v1995
        %v2000 = vpack.c.bf16 %v1996, %v1996
        %v2001 = vpack.c.bf16 %v1997, %v1997
        %v2002 = vpack.c.bf16 %v1998, %v1998
        %v2003 = vpack.c.bf16 %v1999, %v1999
        %v2004 = vld [vmem:[%s764] sm:$0xf]
        %v2005 = vld [vmem:[%s764 + $0x4] sm:$0xf]
        %v2006 = vld [vmem:[%s764 + $0x8] sm:$0xf]
        %v2007 = vld [vmem:[%s764 + $0xc] sm:$0xf]
        %v2008 = vld [vmem:[%s764 + $0x10] sm:$0xf]
        %v2009 = vld [vmem:[%s764 + $0x14] sm:$0xf]
        %v2010 = vld [vmem:[%s764 + $0x18] sm:$0xf]
        %v2011 = vld [vmem:[%s764 + $0x1c] sm:$0xf]
        %v2012 = vld [vmem:[%s764 + $0x20] sm:$0xf]
        %v2013 = vld [vmem:[%s764 + $0x24] sm:$0xf]
        %v2014 = vld [vmem:[%s764 + $0x28] sm:$0xf]
        %v2015 = vld [vmem:[%s764 + $0x2c] sm:$0xf]
        %v2016 = vld [vmem:[%s764 + $0x30] sm:$0xf]
        %v2017 = vld [vmem:[%s764 + $0x34] sm:$0xf]
        %v2018 = vld [vmem:[%s764 + $0x38] sm:$0xf]
        %v2019 = vld [vmem:[%s764 + $0x3c] sm:$0xf]
        %v2020 = vld [vmem:[%s764 + $0x40] sm:$0xf]
        %v2021 = vld [vmem:[%s764 + $0x44] sm:$0xf]
        %v2022 = vld [vmem:[%s764 + $0x48] sm:$0xf]
        %v2023 = vld [vmem:[%s764 + $0x4c] sm:$0xf]
        %v2024 = vld [vmem:[%s764 + $0x50] sm:$0xf]
        %v2025 = vld [vmem:[%s764 + $0x54] sm:$0xf]
        %v2026 = vld [vmem:[%s764 + $0x58] sm:$0xf]
        %v2027 = vld [vmem:[%s764 + $0x5c] sm:$0xf]
        %v2028 = vld [vmem:[%s764 + $0x60] sm:$0xf]
        %v2029 = vld [vmem:[%s764 + $0x64] sm:$0xf]
        %v2030 = vld [vmem:[%s764 + $0x68] sm:$0xf]
        %v2031 = vld [vmem:[%s764 + $0x6c] sm:$0xf]
        %v2032 = vld [vmem:[%s764 + $0x70] sm:$0xf]
        %v2033 = vld [vmem:[%s764 + $0x74] sm:$0xf]
        %v2034 = vld [vmem:[%s764 + $0x78] sm:$0xf]
        %v2035 = vld [vmem:[%s764 + $0x7c] sm:$0xf]
        %v2036 = vld [vmem:[%s764 + $0x80] sm:$0xf]
        %v2037 = vld [vmem:[%s764 + $0x84] sm:$0xf]
        %v2038 = vld [vmem:[%s764 + $0x88] sm:$0xf]
        %v2039 = vld [vmem:[%s764 + $0x8c] sm:$0xf]
        %v2040 = vld [vmem:[%s764 + $0x90] sm:$0xf]
        %v2041 = vld [vmem:[%s764 + $0x94] sm:$0xf]
        %v2042 = vld [vmem:[%s764 + $0x98] sm:$0xf]
        %v2043 = vld [vmem:[%s764 + $0x9c] sm:$0xf]
        %v2044 = vld [vmem:[%s764 + $0xa0] sm:$0xf]
        %v2045 = vld [vmem:[%s764 + $0xa4] sm:$0xf]
        %v2046 = vld [vmem:[%s764 + $0xa8] sm:$0xf]
        %v2047 = vld [vmem:[%s764 + $0xac] sm:$0xf]
        %v2048 = vld [vmem:[%s764 + $0xb0] sm:$0xf]
        %v2049 = vld [vmem:[%s764 + $0xb4] sm:$0xf]
        %v2050 = vld [vmem:[%s764 + $0xb8] sm:$0xf]
        %v2051 = vld [vmem:[%s764 + $0xbc] sm:$0xf]
        %v2052 = vld [vmem:[%s764 + $0xc0] sm:$0xf]
        %v2053 = vld [vmem:[%s764 + $0xc4] sm:$0xf]
        %v2054 = vld [vmem:[%s764 + $0xc8] sm:$0xf]
        %v2055 = vld [vmem:[%s764 + $0xcc] sm:$0xf]
        %v2056 = vld [vmem:[%s764 + $0xd0] sm:$0xf]
        %v2057 = vld [vmem:[%s764 + $0xd4] sm:$0xf]
        %v2058 = vld [vmem:[%s764 + $0xd8] sm:$0xf]
        %v2059 = vld [vmem:[%s764 + $0xdc] sm:$0xf]
        %v2060 = vld [vmem:[%s764 + $0xe0] sm:$0xf]
        %v2061 = vld [vmem:[%s764 + $0xe4] sm:$0xf]
        %v2062 = vld [vmem:[%s764 + $0xe8] sm:$0xf]
        %v2063 = vld [vmem:[%s764 + $0xec] sm:$0xf]
        %v2064 = vld [vmem:[%s764 + $0xf0] sm:$0xf]
        %v2065 = vld [vmem:[%s764 + $0xf4] sm:$0xf]
        %v2066 = vld [vmem:[%s764 + $0xf8] sm:$0xf]
        %v2067 = vld [vmem:[%s764 + $0xfc] sm:$0xf]
        %v2068 = vld [vmem:[%s905] sm:$0x1]
        %v2070 = vperm.slane %v2068, 0
        %v2136 = vunpack.c.l.b16 %v2004
        %v2137 = vunpack.c.l.b16 %v2005
        %v2138 = vunpack.c.l.b16 %v2006
        %v2139 = vunpack.c.l.b16 %v2007
        %v2140 = vunpack.c.l.b16 %v2008
        %v2141 = vunpack.c.l.b16 %v2009
        %v2142 = vunpack.c.l.b16 %v2010
        %v2143 = vunpack.c.l.b16 %v2011
        %v2144 = vunpack.c.l.b16 %v2012
        %v2145 = vunpack.c.l.b16 %v2013
        %v2146 = vunpack.c.l.b16 %v2014
        %v2147 = vunpack.c.l.b16 %v2015
        %v2148 = vunpack.c.l.b16 %v2016
        %v2149 = vunpack.c.l.b16 %v2017
        %v2150 = vunpack.c.l.b16 %v2018
        %v2151 = vunpack.c.l.b16 %v2019
        %v2152 = vunpack.c.l.b16 %v2020
        %v2153 = vunpack.c.l.b16 %v2021
        %v2154 = vunpack.c.l.b16 %v2022
        %v2155 = vunpack.c.l.b16 %v2023
        %v2156 = vunpack.c.l.b16 %v2024
        %v2157 = vunpack.c.l.b16 %v2025
        %v2158 = vunpack.c.l.b16 %v2026
        %v2159 = vunpack.c.l.b16 %v2027
        %v2160 = vunpack.c.l.b16 %v2028
        %v2161 = vunpack.c.l.b16 %v2029
        %v2162 = vunpack.c.l.b16 %v2030
        %v2163 = vunpack.c.l.b16 %v2031
        %v2164 = vunpack.c.l.b16 %v2032
        %v2165 = vunpack.c.l.b16 %v2033
        %v2166 = vunpack.c.l.b16 %v2034
        %v2167 = vunpack.c.l.b16 %v2035
        %v2168 = vunpack.c.l.b16 %v2036
        %v2169 = vunpack.c.l.b16 %v2037
        %v2170 = vunpack.c.l.b16 %v2038
        %v2171 = vunpack.c.l.b16 %v2039
        %v2172 = vunpack.c.l.b16 %v2040
        %v2173 = vunpack.c.l.b16 %v2041
        %v2174 = vunpack.c.l.b16 %v2042
        %v2175 = vunpack.c.l.b16 %v2043
        %v2176 = vunpack.c.l.b16 %v2044
        %v2177 = vunpack.c.l.b16 %v2045
        %v2178 = vunpack.c.l.b16 %v2046
        %v2179 = vunpack.c.l.b16 %v2047
        %v2180 = vunpack.c.l.b16 %v2048
        %v2181 = vunpack.c.l.b16 %v2049
        %v2182 = vunpack.c.l.b16 %v2050
        %v2183 = vunpack.c.l.b16 %v2051
        %v2184 = vunpack.c.l.b16 %v2052
        %v2185 = vunpack.c.l.b16 %v2053
        %v2186 = vunpack.c.l.b16 %v2054
        %v2187 = vunpack.c.l.b16 %v2055
        %v2188 = vunpack.c.l.b16 %v2056
        %v2189 = vunpack.c.l.b16 %v2057
        %v2190 = vunpack.c.l.b16 %v2058
        %v2191 = vunpack.c.l.b16 %v2059
        %v2192 = vunpack.c.l.b16 %v2060
        %v2193 = vunpack.c.l.b16 %v2061
        %v2194 = vunpack.c.l.b16 %v2062
        %v2195 = vunpack.c.l.b16 %v2063
        %v2196 = vunpack.c.l.b16 %v2064
        %v2197 = vunpack.c.l.b16 %v2065
        %v2198 = vunpack.c.l.b16 %v2066
        %v2199 = vunpack.c.l.b16 %v2067
        %v2200 = vpack.c.b16 %v2137, %v2136
        %v2201 = vpack.c.b16 %v2139, %v2138
        %v2202 = vpack.c.b16 %v2141, %v2140
        %v2203 = vpack.c.b16 %v2143, %v2142
        %v2204 = vpack.c.b16 %v2145, %v2144
        %v2205 = vpack.c.b16 %v2147, %v2146
        %v2206 = vpack.c.b16 %v2149, %v2148
        %v2207 = vpack.c.b16 %v2151, %v2150
        %v2208 = vpack.c.b16 %v2153, %v2152
        %v2209 = vpack.c.b16 %v2155, %v2154
        %v2210 = vpack.c.b16 %v2157, %v2156
        %v2211 = vpack.c.b16 %v2159, %v2158
        %v2212 = vpack.c.b16 %v2161, %v2160
        %v2213 = vpack.c.b16 %v2163, %v2162
        %v2214 = vpack.c.b16 %v2165, %v2164
        %v2215 = vpack.c.b16 %v2167, %v2166
        %v2216 = vpack.c.b16 %v2169, %v2168
        %v2217 = vpack.c.b16 %v2171, %v2170
        %v2218 = vpack.c.b16 %v2173, %v2172
        %v2219 = vpack.c.b16 %v2175, %v2174
        %v2220 = vpack.c.b16 %v2177, %v2176
        %v2221 = vpack.c.b16 %v2179, %v2178
        %v2222 = vpack.c.b16 %v2181, %v2180
        %v2223 = vpack.c.b16 %v2183, %v2182
        %v2224 = vpack.c.b16 %v2185, %v2184
        %v2225 = vpack.c.b16 %v2187, %v2186
        %v2226 = vpack.c.b16 %v2189, %v2188
        %v2227 = vpack.c.b16 %v2191, %v2190
        %v2228 = vpack.c.b16 %v2193, %v2192
        %v2229 = vpack.c.b16 %v2195, %v2194
        %v2230 = vpack.c.b16 %v2197, %v2196
        %v2231 = vpack.c.b16 %v2199, %v2198
        %2264 = vmatpush.bf16.msra.mxu0 %v2207
        %2265 = vmatpush.bf16.msra.mxu0 %v2206
        %2266 = vmatpush.bf16.msra.mxu0 %v2205
        %2267 = vmatpush.bf16.msra.mxu0 %v2204
        %2268 = vmatpush.bf16.msra.mxu0 %v2203
        %2269 = vmatpush.bf16.msra.mxu0 %v2202
        %2270 = vmatpush.bf16.msra.mxu0 %v2201
        %2271 = vmatpush.bf16.msra.mxu0 %v2200
        %2272 = vmatmul.bf16.gmra.mxu0 %v2000
        %v2273 = vpop.f32.mrf.mxu0
        %v2274 = vadd.f32 %v2070, %v2273
        %v2275 = vpop.f32.mrf.mxu0
        %2276 = vdwg.mxu0
        %2277 = vmatpush.bf16.msra.mxu0 %v2215
        %2278 = vmatpush.bf16.msra.mxu0 %v2214
        %2279 = vmatpush.bf16.msra.mxu0 %v2213
        %2280 = vmatpush.bf16.msra.mxu0 %v2212
        %2281 = vmatpush.bf16.msra.mxu0 %v2211
        %2282 = vmatpush.bf16.msra.mxu0 %v2210
        %2283 = vmatpush.bf16.msra.mxu0 %v2209
        %2284 = vmatpush.bf16.msra.mxu0 %v2208
        %2285 = vmatmul.bf16.gmra.mxu0 %v2001
        %v2286 = vpop.f32.mrf.mxu0
        %v2287 = vadd.f32 %v2274, %v2286
        %v2288 = vpop.f32.mrf.mxu0
        %2289 = vdwg.mxu0
        %2290 = vmatpush.bf16.msra.mxu0 %v2223
        %2291 = vmatpush.bf16.msra.mxu0 %v2222
        %2292 = vmatpush.bf16.msra.mxu0 %v2221
        %2293 = vmatpush.bf16.msra.mxu0 %v2220
        %2294 = vmatpush.bf16.msra.mxu0 %v2219
        %2295 = vmatpush.bf16.msra.mxu0 %v2218
        %2296 = vmatpush.bf16.msra.mxu0 %v2217
        %2297 = vmatpush.bf16.msra.mxu0 %v2216
        %2298 = vmatmul.bf16.gmra.mxu0 %v2002
        %v2299 = vpop.f32.mrf.mxu0
        %v2300 = vadd.f32 %v2287, %v2299
        %v2301 = vpop.f32.mrf.mxu0
        %2302 = vdwg.mxu0
        %2303 = vmatpush.bf16.msra.mxu0 %v2231
        %2304 = vmatpush.bf16.msra.mxu0 %v2230
        %2305 = vmatpush.bf16.msra.mxu0 %v2229
        %2306 = vmatpush.bf16.msra.mxu0 %v2228
        %2307 = vmatpush.bf16.msra.mxu0 %v2227
        %2308 = vmatpush.bf16.msra.mxu0 %v2226
        %2309 = vmatpush.bf16.msra.mxu0 %v2225
        %2310 = vmatpush.bf16.msra.mxu0 %v2224
        %2311 = vmatmul.bf16.gmra.mxu0 %v2003
        %v2312 = vpop.f32.mrf.mxu0
        %v2313 = vadd.f32 %v2300, %v2312
        %v2314 = vpop.f32.mrf.mxu0
        %2315 = vdwg.mxu0
        %v2316 = vadd.f32 %v1678, %v2313
        %2317 = vst [vmem:[#allocation2] sm:$0xff] %v2316
        %p2318 = scmp.eq.s32.totalorder %s45, 1
        // Predicated region
        $region121: #{vit_forward.1} parent=95 // pred_check
          %p2319 = pneg %p2318
        $region122: #{vit_forward.1} parent=95 // pred_check_branch
          %2321 = sbr.rel (%p2319) target = $region124
        $region123: #{vit_forward.1} parent=95 // pred_region
          %v2322 = vld [vmem:[%s15] sm:$0x1]
          %v2323 = vld [vmem:[%s16] sm:$0x1]
          %vm2324 = vcmask 1040384
          %v2325 = vsel %vm2324, %v2316, 0.0
          %2326 = vadd.xlane.f32.xlu0 %v2325
          %v2327 = vpop.xlane.xlu0 %2326
          %v2328 = vmul.f32 %v2327, %v1087
          %v2329 = vsub.f32 %v2316, %v2328
          %v2330 = vmul.f32 %v2329, %v2329
          %v2331 = vsel %vm2324, %v2330, 0.0
          %2332 = vadd.xlane.f32.xlu0 %v2331
          %v2333 = vpop.xlane.xlu0 %2332
          %v2334 = vmul.f32 %v2333, %v1087
          %v2335 = vadd.f32 %v2334, 1e-06
          %v2336 = vrsqrt.pop %v2335
          %v2337 = vmul.f32 %v2336, %v2335
          %v2338 = vmul.f32 %v2337, %v2336
          %v2339 = vmul.f32 0.5, %v2338
          %v2340 = vsub.f32 1.5, %v2339
          %v2341 = vmul.f32 %v2336, %v2340
          %vm2342 = vweird.f32 %v2335
          %vm2343 = vweird.f32 %v2336
          %vm2344 = vmor %vm2342, %vm2343
          %v2345 = vsel %vm2344, %v2336, %v2341
          %v2346 = vmul.f32 %v2329, %v2345
          %v2347 = vmul.f32 %v2346, %v2322
          %v2348 = vadd.f32 %v2347, %v2323
          %v2349 = vpack.c.bf16 %v2348, %v2348
          %v2350 = vld [vmem:[#allocation11] sm:$0xf]
          %v2351 = vld [vmem:[#allocation11 + $0x4] sm:$0xf]
          %v2352 = vld [vmem:[#allocation11 + $0x8] sm:$0xf]
          %v2353 = vld [vmem:[#allocation11 + $0xc] sm:$0xf]
          %v2354 = vld [vmem:[#allocation11 + $0x10] sm:$0xf]
          %v2355 = vld [vmem:[#allocation11 + $0x14] sm:$0xf]
          %v2356 = vld [vmem:[#allocation11 + $0x18] sm:$0xf]
          %v2357 = vld [vmem:[#allocation11 + $0x1c] sm:$0xf]
          %v2358 = vld [vmem:[#allocation11 + $0x20] sm:$0xf]
          %v2359 = vld [vmem:[#allocation11 + $0x24] sm:$0xf]
          %v2360 = vld [vmem:[#allocation11 + $0x28] sm:$0xf]
          %v2361 = vld [vmem:[#allocation11 + $0x2c] sm:$0xf]
          %v2362 = vld [vmem:[#allocation11 + $0x30] sm:$0xf]
          %v2363 = vld [vmem:[#allocation11 + $0x34] sm:$0xf]
          %v2364 = vld [vmem:[#allocation11 + $0x38] sm:$0xf]
          %v2365 = vld [vmem:[#allocation11 + $0x3c] sm:$0xf]
          %v2366 = vld [vmem:[%s18] sm:$0x1]
          %v2383 = vunpack.c.l.b16 %v2350
          %v2384 = vunpack.c.l.b16 %v2351
          %v2385 = vunpack.c.l.b16 %v2352
          %v2386 = vunpack.c.l.b16 %v2353
          %v2387 = vunpack.c.l.b16 %v2354
          %v2388 = vunpack.c.l.b16 %v2355
          %v2389 = vunpack.c.l.b16 %v2356
          %v2390 = vunpack.c.l.b16 %v2357
          %v2391 = vunpack.c.l.b16 %v2358
          %v2392 = vunpack.c.l.b16 %v2359
          %v2393 = vunpack.c.l.b16 %v2360
          %v2394 = vunpack.c.l.b16 %v2361
          %v2395 = vunpack.c.l.b16 %v2362
          %v2396 = vunpack.c.l.b16 %v2363
          %v2397 = vunpack.c.l.b16 %v2364
          %v2398 = vunpack.c.l.b16 %v2365
          %v2399 = vpack.c.b16 %v2384, %v2383
          %v2400 = vpack.c.b16 %v2386, %v2385
          %v2401 = vpack.c.b16 %v2388, %v2387
          %v2402 = vpack.c.b16 %v2390, %v2389
          %v2403 = vpack.c.b16 %v2392, %v2391
          %v2404 = vpack.c.b16 %v2394, %v2393
          %v2405 = vpack.c.b16 %v2396, %v2395
          %v2406 = vpack.c.b16 %v2398, %v2397
          %2415 = vmatpush.bf16.msra.mxu0 %v2406
          %2416 = vmatpush.bf16.msra.mxu0 %v2405
          %2417 = vmatpush.bf16.msra.mxu0 %v2404
          %2418 = vmatpush.bf16.msra.mxu0 %v2403
          %2419 = vmatpush.bf16.msra.mxu0 %v2402
          %2420 = vmatpush.bf16.msra.mxu0 %v2401
          %2421 = vmatpush.bf16.msra.mxu0 %v2400
          %2422 = vmatpush.bf16.msra.mxu0 %v2399
          %2423 = vmatmul.bf16.gmra.mxu0 %v2349
          %v2424 = vpop.f32.mrf.mxu0
          %v2425 = vadd.f32 %v2366, %v2424
          %v2426 = vpop.f32.mrf.mxu0
          %2427 = vdwg.mxu0
          %2428 = vst [vmem:[%s869] sm:$0x1] %v2425
        $region124: #{vit_forward.1} parent=95 // pred_fallthru
          _
        %s2429 = sand.u32 %s524, 1
        %s2430 = scalar_lea.sflag [#allocation5], %s2429
        %s2431 = sand.u32 %s524, 1
        %s2432 = scalar_lea.vmem [#allocation12], %s2431
        // Predicated region
        $region125: #{vit_forward.1} parent=95 // pred_check
          %p2433 = pneg %p534
        $region126: #{vit_forward.1} parent=95 // pred_check_branch
          %2435 = sbr.rel (%p2433) target = $region128
        $region127: #{vit_forward.1} parent=95 // pred_region
          %2437 = vsyncadd %s2430, 0
          %s2438 = scalar_lea.hbm %s19, %s44
          %s2440 = sshll.u32 %s2432, 4
          %s2441 = int_to_ptr.vmem [resolvable:$true] %s2440
          %s2442 = sshll.u32 %s2438, 4
          %s2443 = int_to_ptr.hbm [resolvable:$true] %s2442
          %2445 = dma.vmem_to_hbm [thread:$0]  %s2441, 16, %s2443, %s2430
        $region128: #{vit_forward.1} parent=95 // pred_fallthru
          _
      $region96: #{vit_forward.1} parent=5 // pred_fallthru
        _
      %p2446 = scmp.le.s32.totalorder 2, %s35
      // Predicated region
      $region129: #{vit_forward.1} parent=5 // pred_check
        %p2447 = pneg %p2446
      $region130: #{vit_forward.1} parent=5 // pred_check_branch
        %2449 = sbr.rel (%p2447) target = $region132
      $region131: #{vit_forward.1} parent=5 // pred_region
        %s2450 = ssub.s32 %s35, 2
        // Predicated region
        $region133: #{vit_forward.1} parent=131 // pred_check
          %p2451 = pneg %p540
        $region134: #{vit_forward.1} parent=131 // pred_check_branch
          %2453 = sbr.rel (%p2451) target = $region136
        $region135: #{vit_forward.1} parent=131 // pred_region
          %s2454 = sand.u32 %s525, 1
          %s2455 = scalar_lea.sflag [#allocation5], %s2454
          %s2456 = sand.u32 %s525, 1
          %s2457 = scalar_lea.vmem [#allocation12], %s2456
          %2459 = dma.done %s2455, 16
        $region136: #{vit_forward.1} parent=131 // pred_fallthru
          _
      $region132: #{vit_forward.1} parent=5 // pred_fallthru
        _
    $region6: #{vit_forward.1} parent=1 // loop_footer
      %s39 = sadd.s32 1, %s35
    $region7: #{vit_forward.1} parent=1 // loop_footer_branch
      %34 = sbr.rel target = $region3
    $region8: #{vit_forward.1} parent=1 // loop_exit
      _
    %2460 = vsyncpa [#allocation4], 1
    %s2461 = scalar_lea.sflag [#allocation4], 1
    %2462 = vsyncpa %s2461, 1
    %2463 = vsyncpa [#allocation7], 1
    %s2464 = scalar_lea.sflag [#allocation7], 1
    %2465 = vsyncpa %s2464, 1
    %2466 = vsyncpa [#allocation10], 1
    %s2467 = scalar_lea.sflag [#allocation10], 1
    %2468 = vsyncpa %s2467, 1
    %2469 = vsyncpa [#allocation5], 1
    %s2470 = scalar_lea.sflag [#allocation5], 1
    %2471 = vsyncpa %s2470, 1

</llo_original>
